<compile_context>
chip_gen: v5e
topology: v5e:2x2
jax: 0.10.0
libtpu: 0.0.40
codegen_flags: <defaults>
</compile_context>

<pallas_src>
import functools

import jax
import jax.numpy as jnp
from jax.experimental import pallas as pl
from jax.experimental.pallas import tpu as pltpu


def _gelu_exact(x):
    # torch.nn.GELU() default ("none" approximation) = exact erf-based GELU
    return x * 0.5 * (1.0 + jax.lax.erf(x * (1.0 / jnp.sqrt(2.0).astype(x.dtype))))


def _round_up(x, m):
    return (x + m - 1) // m * m


def mlp_kernel(x_ref, gamma_ref, beta_ref, w1_ref, b1_ref, w2_ref, b2_ref,
               o_ref, xn_ref, acc_ref):
    kh = pl.program_id(1)

    # ----- First H-chunk: LayerNorm once per row tile, zero the accumulator -----
    @pl.when(kh == 0)
    def _():
        x = x_ref[...].astype(jnp.float32)                 # (tm, E) f32
        eps = jnp.float32(1e-5)
        mean = jnp.mean(x, axis=-1, keepdims=True)
        xc = x - mean
        var = jnp.mean(xc * xc, axis=-1, keepdims=True)    # biased variance (torch)
        xn = xc * jax.lax.rsqrt(var + eps)
        xn = xn * gamma_ref[...] + beta_ref[...]           # (1,E) broadcasts over rows
        xn_ref[...] = xn.astype(xn_ref.dtype)              # bf16 MXU operand, reused across kh
        acc_ref[...] = jnp.zeros_like(acc_ref)

    # ----- Linear(E -> th chunk of H) + GELU (f32 elementwise) -----
    h = jnp.dot(xn_ref[...], w1_ref[...], preferred_element_type=jnp.float32)
    h = h + b1_ref[...]                                    # (1, th) f32 bias
    h = _gelu_exact(h)
    # Dropout (p=0.1) -> identity in eval mode.

    # ----- Linear(th chunk of H -> E), accumulate in f32 -----
    acc_ref[...] += jnp.dot(h.astype(jnp.bfloat16), w2_ref[...],
                            preferred_element_type=jnp.float32)

    # ----- Last H-chunk: add output bias, store -----
    @pl.when(kh == pl.num_programs(1) - 1)
    def _():
        # Dropout (p=0.1) -> identity in eval mode.
        o_ref[...] = (acc_ref[...] + b2_ref[...]).astype(o_ref.dtype)


@functools.partial(jax.jit, static_argnames=("block_rows", "block_h"))
def mlp_forward(x, gamma, beta, w1, b1, w2, b2, *, block_rows=256, block_h=512):
    """x: [B, S, E].  w1: [E, H], w2: [H, E] (already transposed vs torch)."""
    B, S, E = x.shape
    H = w1.shape[1]
    N = B * S

    # Row tile: MXU-sized, but never larger than the (128-aligned) problem.
    tm = min(block_rows, _round_up(N, 128))
    n_pad = _round_up(N, tm)

    # Hidden-dim reduction tile (bounds resident W1/W2 chunks + (tm, th) GELU
    # intermediate).  Fall back to the full H if it doesn't divide evenly.
    th = block_h if H % block_h == 0 else H

    x2 = x.reshape(N, E)
    if n_pad != N:
        x2 = jnp.pad(x2, ((0, n_pad - N), (0, 0)))         # zero rows are harmless (LN eps)

    gamma2 = gamma.reshape(1, E).astype(jnp.float32)
    beta2 = beta.reshape(1, E).astype(jnp.float32)
    b1_2 = b1.reshape(1, H).astype(jnp.float32)
    b2_2 = b2.reshape(1, E).astype(jnp.float32)
    w1_bf = w1.astype(jnp.bfloat16)                        # bf16 weights: MXU-native, half the DMA bytes
    w2_bf = w2.astype(jnp.bfloat16)

    n_row_tiles = n_pad // tm
    grid = (n_row_tiles, H // th)

    cost = pl.CostEstimate(
        flops=4 * n_pad * E * H,                           # two (N,E,H) matmuls
        transcendentals=n_pad * H,                         # erf per hidden activation
        bytes_accessed=(2 * n_pad * E * 4                  # x in + out (f32)
                        + n_row_tiles * (2 * E * H * 2)    # W1 + W2 (bf16) streamed per row tile
                        + (H + 3 * E) * 4),                # biases / gamma / beta
    )

    out = pl.pallas_call(
        mlp_kernel,
        out_shape=jax.ShapeDtypeStruct((n_pad, E), x.dtype),
        grid_spec=pltpu.PrefetchScalarGridSpec(
            num_scalar_prefetch=0,
            grid=grid,
            in_specs=[
                pl.BlockSpec((tm, E), lambda i, kh: (i, 0)),    # x row tile
                pl.BlockSpec((1, E), lambda i, kh: (0, 0)),     # ln gamma
                pl.BlockSpec((1, E), lambda i, kh: (0, 0)),     # ln beta
                pl.BlockSpec((E, th), lambda i, kh: (0, kh)),   # W1 column chunk
                pl.BlockSpec((1, th), lambda i, kh: (0, kh)),   # b1 chunk
                pl.BlockSpec((th, E), lambda i, kh: (kh, 0)),   # W2 row chunk
                pl.BlockSpec((1, E), lambda i, kh: (0, 0)),     # b2
            ],
            out_specs=pl.BlockSpec((tm, E), lambda i, kh: (i, 0)),
            scratch_shapes=[
                pltpu.VMEM((tm, E), jnp.bfloat16),   # normalized activations (reused across H chunks)
                pltpu.VMEM((tm, E), jnp.float32),    # f32 accumulator for the second matmul
            ],
        ),
        compiler_params=pltpu.CompilerParams(
            # Row axis is parallel (megacore / 2 TCs on v7x); H axis is a reduction.
            dimension_semantics=("parallel", "arbitrary"),
            # Headroom above the 16/32 MiB scoped defaults, <= v7x's 64 MiB physical VMEM.
            vmem_limit_bytes=64 * 1024 * 1024,
        ),
        cost_estimate=cost,
    )(x2, gamma2, beta2, w1_bf, b1_2, w2_bf, b2_2)

    if n_pad != N:
        out = out[:N]
    return out.reshape(B, S, E)


def reference_forward(x, gamma, beta, w1, b1, w2, b2):
    mean = jnp.mean(x, axis=-1, keepdims=True)
    var = jnp.mean((x - mean) ** 2, axis=-1, keepdims=True)
    xn = (x - mean) * jax.lax.rsqrt(var + 1e-5) * gamma + beta
    h = _gelu_exact(xn @ w1 + b1)
    return h @ w2 + b2


if __name__ == "__main__":
    # Small shapes consistent with the module (embedding_dim=E, num_hiddens=H).
    B, S, E, H = 2, 8, 128, 256

    key = jax.random.PRNGKey(0)
    kx, kg, kb, kw1, kb1, kw2, kb2 = jax.random.split(key, 7)

    x = jax.random.normal(kx, (B, S, E), dtype=jnp.float32)

    # Deterministic parameter init (shapes follow nn.LayerNorm / nn.Linear).
    gamma = jnp.ones((E,), jnp.float32) + 0.01 * jax.random.normal(kg, (E,), jnp.float32)
    beta = 0.01 * jax.random.normal(kb, (E,), jnp.float32)
    w1 = jax.random.normal(kw1, (E, H), jnp.float32) * (1.0 / jnp.sqrt(E))   # [in, out]
    b1 = 0.01 * jax.random.normal(kb1, (H,), jnp.float32)
    w2 = jax.random.normal(kw2, (H, E), jnp.float32) * (1.0 / jnp.sqrt(H))   # [in, out]
    b2 = 0.01 * jax.random.normal(kb2, (E,), jnp.float32)

    # Small blocks so the demo exercises both the row-padding path (N=16 -> 128)
    # and the multi-step H reduction (H=256 / 128 = 2 chunks).
    out = mlp_forward(x, gamma, beta, w1, b1, w2, b2, block_rows=128, block_h=128)
    out = jax.block_until_ready(out)

    ref = reference_forward(x, gamma, beta, w1, b1, w2, b2)
    assert out.shape == (B, S, E)
    max_err = float(jnp.max(jnp.abs(out - ref)))
    # bf16 MXU operands with f32 accumulation -> loosened tolerance vs the f32 reference.
    assert jnp.allclose(out, ref, atol=5e-2, rtol=5e-2), f"mismatch vs reference (max abs err {max_err})"

    print("KERNEL_OK")
</pallas_src>

<mosaic_0001>
module attributes {stable_mosaic.version = 11 : i64} {
  func.func @mlp_kernel(%arg0: i32, %arg1: i32, %arg2: memref<128x128xf32, #tpu.memory_space<vmem>>, %arg3: memref<1x128xf32, #tpu.memory_space<vmem>>, %arg4: memref<1x128xf32, #tpu.memory_space<vmem>>, %arg5: memref<128x128xbf16, #tpu.memory_space<vmem>>, %arg6: memref<1x128xf32, #tpu.memory_space<vmem>>, %arg7: memref<128x128xbf16, #tpu.memory_space<vmem>>, %arg8: memref<1x128xf32, #tpu.memory_space<vmem>>, %arg9: memref<128x128xf32, #tpu.memory_space<vmem>>, %arg10: memref<128x128xbf16, #tpu.memory_space<vmem>>, %arg11: memref<128x128xf32, #tpu.memory_space<vmem>>) attributes {dimension_semantics = [#tpu.dimension_semantics<parallel>, #tpu.dimension_semantics<arbitrary>], iteration_bounds = array<i64: 1, 2>, scalar_prefetch = 0 : i64, scratch_operands = 2 : i64, tpu.core_type = #tpu.core_type<tc>, window_params = [{transform_indices = @transform_0, window_bounds = array<i64: 128, 128>}, {pipeline_mode = #tpu.pipeline_mode<synchronous>, transform_indices = @transform_1, window_bounds = array<i64: 1, 128>}, {pipeline_mode = #tpu.pipeline_mode<synchronous>, transform_indices = @transform_2, window_bounds = array<i64: 1, 128>}, {transform_indices = @transform_3, window_bounds = array<i64: 128, 128>}, {transform_indices = @transform_4, window_bounds = array<i64: 1, 128>}, {transform_indices = @transform_5, window_bounds = array<i64: 128, 128>}, {pipeline_mode = #tpu.pipeline_mode<synchronous>, transform_indices = @transform_6, window_bounds = array<i64: 1, 128>}, {transform_indices = @transform_7, window_bounds = array<i64: 128, 128>}]} {
    %c0_i32 = arith.constant 0 : i32
    %0 = arith.cmpi eq, %arg1, %c0_i32 : i32
    %1 = arith.extui %0 : i1 to i32
    %c0_i32_0 = arith.constant 0 : i32
    %2 = arith.cmpi ne, %1, %c0_i32_0 : i32
    scf.if %2 {
      %c0_18 = arith.constant 0 : index
      %c0_19 = arith.constant 0 : index
      %28 = vector.load %arg2[%c0_18, %c0_19] : memref<128x128xf32, #tpu.memory_space<vmem>>, vector<128x128xf32>
      %cst_20 = arith.constant dense<0.000000e+00> : vector<128xf32>
      %29 = vector.multi_reduction <add>, %28, %cst_20 [1] : vector<128x128xf32> to vector<128xf32>
      %30 = vector.shape_cast %29 : vector<128xf32> to vector<128x1xf32>
      %cst_21 = arith.constant 1.280000e+02 : f32
      %31 = vector.broadcast %cst_21 : f32 to vector<128x1xf32>
      %32 = arith.divf %30, %31 : vector<128x1xf32>
      %33 = vector.broadcast %32 : vector<128x1xf32> to vector<128x128xf32>
      %34 = arith.subf %28, %33 : vector<128x128xf32>
      %35 = arith.mulf %34, %34 : vector<128x128xf32>
      %cst_22 = arith.constant dense<0.000000e+00> : vector<128xf32>
      %36 = vector.multi_reduction <add>, %35, %cst_22 [1] : vector<128x128xf32> to vector<128xf32>
      %37 = vector.shape_cast %36 : vector<128xf32> to vector<128x1xf32>
      %cst_23 = arith.constant 1.280000e+02 : f32
      %38 = vector.broadcast %cst_23 : f32 to vector<128x1xf32>
      %39 = arith.divf %37, %38 : vector<128x1xf32>
      %cst_24 = arith.constant 9.99999974E-6 : f32
      %40 = vector.broadcast %cst_24 : f32 to vector<128x1xf32>
      %41 = arith.addf %39, %40 : vector<128x1xf32>
      %42 = math.rsqrt %41 : vector<128x1xf32>
      %43 = vector.broadcast %42 : vector<128x1xf32> to vector<128x128xf32>
      %44 = arith.mulf %34, %43 : vector<128x128xf32>
      %c0_25 = arith.constant 0 : index
      %c0_26 = arith.constant 0 : index
      %45 = vector.load %arg3[%c0_25, %c0_26] : memref<1x128xf32, #tpu.memory_space<vmem>>, vector<1x128xf32>
      %46 = vector.broadcast %45 : vector<1x128xf32> to vector<128x128xf32>
      %47 = arith.mulf %44, %46 : vector<128x128xf32>
      %c0_27 = arith.constant 0 : index
      %c0_28 = arith.constant 0 : index
      %48 = vector.load %arg4[%c0_27, %c0_28] : memref<1x128xf32, #tpu.memory_space<vmem>>, vector<1x128xf32>
      %49 = vector.broadcast %48 : vector<1x128xf32> to vector<128x128xf32>
      %50 = arith.addf %47, %49 : vector<128x128xf32>
      %51 = arith.truncf %50 : vector<128x128xf32> to vector<128x128xbf16>
      %c0_29 = arith.constant 0 : index
      %c0_30 = arith.constant 0 : index
      %52 = vector.load %arg10[%c0_29, %c0_30] : memref<128x128xbf16, #tpu.memory_space<vmem>>, vector<128x128xbf16>
      tpu.vector_store %arg10[%c0_29, %c0_30], %51 {strides = array<i32>} : memref<128x128xbf16, #tpu.memory_space<vmem>>, vector<128x128xbf16>,
      %cst_31 = arith.constant 0.000000e+00 : f32
      %53 = vector.broadcast %cst_31 : f32 to vector<128x128xf32>
      %c0_32 = arith.constant 0 : index
      %c0_33 = arith.constant 0 : index
      %54 = vector.load %arg11[%c0_32, %c0_33] : memref<128x128xf32, #tpu.memory_space<vmem>>, vector<128x128xf32>
      tpu.vector_store %arg11[%c0_32, %c0_33], %53 {strides = array<i32>} : memref<128x128xf32, #tpu.memory_space<vmem>>, vector<128x128xf32>,
    } else {
    }
    %c0 = arith.constant 0 : index
    %c0_1 = arith.constant 0 : index
    %3 = vector.load %arg10[%c0, %c0_1] : memref<128x128xbf16, #tpu.memory_space<vmem>>, vector<128x128xbf16>
    %c0_2 = arith.constant 0 : index
    %c0_3 = arith.constant 0 : index
    %4 = vector.load %arg5[%c0_2, %c0_3] : memref<128x128xbf16, #tpu.memory_space<vmem>>, vector<128x128xbf16>
    %cst = arith.constant dense<0.000000e+00> : vector<128x128xf32>
    %5 = tpu.matmul %3, %4, %cst {dimension_numbers = #tpu.dot_dimension_numbers<[1], [0], [0], [1], [0, 0, 1, 1], [], []>} : vector<128x128xbf16>, vector<128x128xbf16>, vector<128x128xf32> -> vector<128x128xf32>
    %c0_4 = arith.constant 0 : index
    %c0_5 = arith.constant 0 : index
    %6 = vector.load %arg6[%c0_4, %c0_5] : memref<1x128xf32, #tpu.memory_space<vmem>>, vector<1x128xf32>
    %7 = vector.broadcast %6 : vector<1x128xf32> to vector<128x128xf32>
    %8 = arith.addf %5, %7 : vector<128x128xf32>
    %cst_6 = arith.constant 5.000000e-01 : f32
    %9 = vector.broadcast %cst_6 : f32 to vector<128x128xf32>
    %10 = arith.mulf %8, %9 : vector<128x128xf32>
    %cst_7 = arith.constant 2.000000e+00 : f32
    %11 = math.sqrt %cst_7 : f32
    %cst_8 = arith.constant 1.000000e+00 : f32
    %12 = arith.divf %cst_8, %11 : f32
    %13 = vector.broadcast %12 : f32 to vector<128x128xf32>
    %14 = arith.mulf %8, %13 : vector<128x128xf32>
    %15 = math.erf %14 : vector<128x128xf32>
    %cst_9 = arith.constant 1.000000e+00 : f32
    %16 = vector.broadcast %cst_9 : f32 to vector<128x128xf32>
    %17 = arith.addf %16, %15 : vector<128x128xf32>
    %18 = arith.mulf %10, %17 : vector<128x128xf32>
    %c0_10 = arith.constant 0 : index
    %c0_11 = arith.constant 0 : index
    %19 = vector.load %arg11[%c0_10, %c0_11] : memref<128x128xf32, #tpu.memory_space<vmem>>, vector<128x128xf32>
    %20 = arith.truncf %18 : vector<128x128xf32> to vector<128x128xbf16>
    %c0_12 = arith.constant 0 : index
    %c0_13 = arith.constant 0 : index
    %21 = vector.load %arg7[%c0_12, %c0_13] : memref<128x128xbf16, #tpu.memory_space<vmem>>, vector<128x128xbf16>
    %cst_14 = arith.constant dense<0.000000e+00> : vector<128x128xf32>
    %22 = tpu.matmul %20, %21, %cst_14 {dimension_numbers = #tpu.dot_dimension_numbers<[1], [0], [0], [1], [0, 0, 1, 1], [], []>} : vector<128x128xbf16>, vector<128x128xbf16>, vector<128x128xf32> -> vector<128x128xf32>
    %23 = arith.addf %19, %22 : vector<128x128xf32>
    %c0_15 = arith.constant 0 : index
    %c0_16 = arith.constant 0 : index
    %24 = vector.load %arg11[%c0_15, %c0_16] : memref<128x128xf32, #tpu.memory_space<vmem>>, vector<128x128xf32>
    tpu.vector_store %arg11[%c0_15, %c0_16], %23 {strides = array<i32>} : memref<128x128xf32, #tpu.memory_space<vmem>>, vector<128x128xf32>,
    %c1_i32 = arith.constant 1 : i32
    %25 = arith.cmpi eq, %arg1, %c1_i32 : i32
    %26 = arith.extui %25 : i1 to i32
    %c0_i32_17 = arith.constant 0 : i32
    %27 = arith.cmpi ne, %26, %c0_i32_17 : i32
    scf.if %27 {
      %c0_18 = arith.constant 0 : index
      %c0_19 = arith.constant 0 : index
      %28 = vector.load %arg11[%c0_18, %c0_19] : memref<128x128xf32, #tpu.memory_space<vmem>>, vector<128x128xf32>
      %c0_20 = arith.constant 0 : index
      %c0_21 = arith.constant 0 : index
      %29 = vector.load %arg8[%c0_20, %c0_21] : memref<1x128xf32, #tpu.memory_space<vmem>>, vector<1x128xf32>
      %30 = vector.broadcast %29 : vector<1x128xf32> to vector<128x128xf32>
      %31 = arith.addf %28, %30 : vector<128x128xf32>
      %c0_22 = arith.constant 0 : index
      %c0_23 = arith.constant 0 : index
      %32 = vector.load %arg9[%c0_22, %c0_23] : memref<128x128xf32, #tpu.memory_space<vmem>>, vector<128x128xf32>
      tpu.vector_store %arg9[%c0_22, %c0_23], %31 {strides = array<i32>} : memref<128x128xf32, #tpu.memory_space<vmem>>, vector<128x128xf32>,
    } else {
    }
    return
  }
  func.func @transform_0(%arg0: i32, %arg1: i32) -> (i32, i32) {
    %c0_i32 = arith.constant 0 : i32
    %c0_i32_0 = arith.constant 0 : i32
    return %arg0, %c0_i32 : i32, i32
  }
  func.func @transform_1(%arg0: i32, %arg1: i32) -> (i32, i32) {
    %c0_i32 = arith.constant 0 : i32
    %c0_i32_0 = arith.constant 0 : i32
    %c0_i32_1 = arith.constant 0 : i32
    return %c0_i32, %c0_i32_0 : i32, i32
  }
  func.func @transform_2(%arg0: i32, %arg1: i32) -> (i32, i32) {
    %c0_i32 = arith.constant 0 : i32
    %c0_i32_0 = arith.constant 0 : i32
    %c0_i32_1 = arith.constant 0 : i32
    return %c0_i32, %c0_i32_0 : i32, i32
  }
  func.func @transform_3(%arg0: i32, %arg1: i32) -> (i32, i32) {
    %c0_i32 = arith.constant 0 : i32
    %c0_i32_0 = arith.constant 0 : i32
    return %c0_i32, %arg1 : i32, i32
  }
  func.func @transform_4(%arg0: i32, %arg1: i32) -> (i32, i32) {
    %c0_i32 = arith.constant 0 : i32
    %c0_i32_0 = arith.constant 0 : i32
    return %c0_i32, %arg1 : i32, i32
  }
  func.func @transform_5(%arg0: i32, %arg1: i32) -> (i32, i32) {
    %c0_i32 = arith.constant 0 : i32
    %c0_i32_0 = arith.constant 0 : i32
    return %arg1, %c0_i32 : i32, i32
  }
  func.func @transform_6(%arg0: i32, %arg1: i32) -> (i32, i32) {
    %c0_i32 = arith.constant 0 : i32
    %c0_i32_0 = arith.constant 0 : i32
    %c0_i32_1 = arith.constant 0 : i32
    return %c0_i32, %c0_i32_0 : i32, i32
  }
  func.func @transform_7(%arg0: i32, %arg1: i32) -> (i32, i32) {
    %c0_i32 = arith.constant 0 : i32
    %c0_i32_0 = arith.constant 0 : i32
    return %arg0, %c0_i32 : i32, i32
  }
}

</mosaic_0001>

<llo_original>
// kernel: mlp_forward.1
$region0: #{mlp_forward.1}
  #allocation0 [shape = 'u32[]', space=smem, size = 0x4, offset = 0x4, fixed_abs, tag = 'smem constant byte address 0x4 - core index']
  #allocation1 [shape = 'u32[72,128]{1,0:T(1,128)}', space=vmem, size = 0x9000, scoped, tag = 'internal scratch']
  #allocation2 [shape = 'bf16[128,128]{1,0:T(8,128)(2,1)}', space=vmem, size = 0x8000, scoped, tag = 'scratch operand']
  #allocation3 [shape = 'f32[128,128]{1,0:T(8,128)}', space=vmem, size = 0x10000, scoped, tag = 'scratch operand']
  %s0 = inlined_call_operand.vmem [shape: f32[128,128], index: 0, kind: input, shape index: {}]
  %s1 = inlined_call_operand.vmem [shape: f32[1,128], index: 1, kind: input, shape index: {}]
  %s2 = inlined_call_operand.vmem [shape: f32[1,128], index: 2, kind: input, shape index: {}]
  %s3 = inlined_call_operand.vmem [shape: bf16[128,256], index: 3, kind: input, shape index: {}]
  %s4 = inlined_call_operand.vmem [shape: f32[1,256], index: 4, kind: input, shape index: {}]
  %s5 = inlined_call_operand.vmem [shape: bf16[256,128], index: 5, kind: input, shape index: {}]
  %s6 = inlined_call_operand.vmem [shape: f32[1,128], index: 6, kind: input, shape index: {}]
  %s7 = inlined_call_operand.vmem [shape: f32[128,128], index: 7, kind: output, shape index: {}]
  %s8 = sld [smem:[#allocation0]]
  $region110: #{mlp_forward.1} parent=0
    _
  %s10 = ssub.s32 1, %s8
  %s11 = scalar_select 0, %s10, %s8
  $region1: #{mlp_forward.1} parent=0
    #allocation4 [shape = 'u8[65536]{0}', space=vmem, size = 0x10000, scoped, tag = 'input window, operand 3']
    loop: start=0, step=1, limit=4
    $region2: #{mlp_forward.1} parent=1 // loop_pre_header
      _
    $region3: #{mlp_forward.1} parent=1 // loop_header
      %s13 = sphi 0, %s17
      %p14 = scmp.ge.s32.totalorder %s13, 4
      %s20 = sphi 0, %s32
      %s21 = sphi 0, %s28
      %s22 = sphi 0, %s20
      %s23 = sphi 0, %s21
      %s24 = sphi 0, %s22
      %s25 = sphi 0, %s23
      %s35 = sphi 0, %s37
      %s38 = sphi 0, %s35
      %s39 = sphi 0, %s38
      %s55 = sphi 0, %s39
      %s59 = sphi 0, %s59
      %s61 = sphi 0, %s59
      %s62 = sphi 0, %s61
      %s76 = sphi 0, %s62
      %s80 = sphi 0, %s80
      %s82 = sphi 0, %s80
      %s83 = sphi 0, %s82
      %s97 = sphi 0, %s83
      %s103 = sphi 0, %s105
      %s106 = sphi 0, %s103
      %s107 = sphi 0, %s106
      %s123 = sphi 0, %s107
      %s129 = sphi 0, %s131
      %s132 = sphi 0, %s129
      %s133 = sphi 0, %s132
      %s149 = sphi 0, %s133
      %s155 = sphi 0, %s157
      %s158 = sphi 0, %s155
      %s159 = sphi 0, %s158
      %s175 = sphi 0, %s159
      %s179 = sphi 0, %s179
      %s181 = sphi 0, %s179
      %s182 = sphi 0, %s181
      %s196 = sphi 0, %s182
      %s202 = sphi 0, %s204
      %s205 = sphi 0, %s202
      %s206 = sphi 0, %s205
      %s222 = sphi 0, %s206
    $region4: #{mlp_forward.1} parent=1 // loop_header_branch
      %16 = sbr.rel (%p14) target = $region8
    $region5: #{mlp_forward.1} parent=1 // loop_body
      %s18 = ssub.s32 %s13, 1
      %s19 = ssub.s32 %s13, 2
      %s26 = sadd.s32 1, %s21
      %p27 = scmp.ge.s32.totalorder %s26, 2
      %s28 = scalar_select %p27, 0, %s26
      %s29 = sadd.s32 1, %s20
      %s30 = scalar_select %p27, %s29, %s20
      %p31 = scmp.ge.s32.totalorder %s30, 1
      %s32 = scalar_select %p31, 0, %s30
      %s33 = ssub.s32 %s20, %s32
      %p34 = scmp.eq.s32.totalorder %s33, 0
      %s36 = sadd.s32 %s35, 1
      %s37 = scalar_select %p34, %s35, %s36
      %p40 = pneg %p34
      %p41 = scmp.eq.s32.totalorder %s13, 1
      %p42 = por %p40, %p41
      %p43 = scmp.ne.s32.totalorder %s35, %s38
      %p44 = scmp.eq.s32.totalorder %s13, 0
      %p45 = por %p43, %p44
      %p46 = scmp.ne.s32.totalorder %s35, %s38
      %p47 = scmp.eq.s32.totalorder %s18, 1
      %p48 = por %p46, %p47
      %p49 = scmp.ne.s32.totalorder %s38, %s39
      %p50 = scmp.eq.s32.totalorder %s18, 0
      %p51 = por %p49, %p50
      %p52 = scmp.ne.s32.totalorder %s38, %s39
      %p53 = scmp.eq.s32.totalorder %s19, 1
      %p54 = por %p52, %p53
      %p56 = scmp.ne.s32.totalorder %s39, %s55
      %p57 = scmp.eq.s32.totalorder %s19, 0
      %p58 = por %p56, %p57
      %s60 = sadd.s32 %s59, 1
      %p63 = scmp.eq.s32.totalorder %s13, 1
      %p64 = scmp.ne.s32.totalorder %s59, %s61
      %p65 = scmp.eq.s32.totalorder %s13, 0
      %p66 = por %p64, %p65
      %p67 = scmp.ne.s32.totalorder %s59, %s61
      %p68 = scmp.eq.s32.totalorder %s18, 1
      %p69 = por %p67, %p68
      %p70 = scmp.ne.s32.totalorder %s61, %s62
      %p71 = scmp.eq.s32.totalorder %s18, 0
      %p72 = por %p70, %p71
      %p73 = scmp.ne.s32.totalorder %s61, %s62
      %p74 = scmp.eq.s32.totalorder %s19, 1
      %p75 = por %p73, %p74
      %p77 = scmp.ne.s32.totalorder %s62, %s76
      %p78 = scmp.eq.s32.totalorder %s19, 0
      %p79 = por %p77, %p78
      %s81 = sadd.s32 %s80, 1
      %p84 = scmp.eq.s32.totalorder %s13, 1
      %p85 = scmp.ne.s32.totalorder %s80, %s82
      %p86 = scmp.eq.s32.totalorder %s13, 0
      %p87 = por %p85, %p86
      %p88 = scmp.ne.s32.totalorder %s80, %s82
      %p89 = scmp.eq.s32.totalorder %s18, 1
      %p90 = por %p88, %p89
      %p91 = scmp.ne.s32.totalorder %s82, %s83
      %p92 = scmp.eq.s32.totalorder %s18, 0
      %p93 = por %p91, %p92
      %p94 = scmp.ne.s32.totalorder %s82, %s83
      %p95 = scmp.eq.s32.totalorder %s19, 1
      %p96 = por %p94, %p95
      %p98 = scmp.ne.s32.totalorder %s83, %s97
      %p99 = scmp.eq.s32.totalorder %s19, 0
      %p100 = por %p98, %p99
      %s101 = ssub.s32 %s21, %s28
      %p102 = scmp.eq.s32.totalorder %s101, 0
      %s104 = sadd.s32 %s103, 1
      %s105 = scalar_select %p102, %s103, %s104
      %p108 = pneg %p102
      %p109 = scmp.eq.s32.totalorder %s13, 1
      %p110 = por %p108, %p109
      %p111 = scmp.ne.s32.totalorder %s103, %s106
      %p112 = scmp.eq.s32.totalorder %s13, 0
      %p113 = por %p111, %p112
      %p114 = scmp.ne.s32.totalorder %s103, %s106
      %p115 = scmp.eq.s32.totalorder %s18, 1
      %p116 = por %p114, %p115
      %p117 = scmp.ne.s32.totalorder %s106, %s107
      %p118 = scmp.eq.s32.totalorder %s18, 0
      %p119 = por %p117, %p118
      %p120 = scmp.ne.s32.totalorder %s106, %s107
      %p121 = scmp.eq.s32.totalorder %s19, 1
      %p122 = por %p120, %p121
      %p124 = scmp.ne.s32.totalorder %s107, %s123
      %p125 = scmp.eq.s32.totalorder %s19, 0
      %p126 = por %p124, %p125
      %s127 = ssub.s32 %s21, %s28
      %p128 = scmp.eq.s32.totalorder %s127, 0
      %s130 = sadd.s32 %s129, 1
      %s131 = scalar_select %p128, %s129, %s130
      %p134 = pneg %p128
      %p135 = scmp.eq.s32.totalorder %s13, 1
      %p136 = por %p134, %p135
      %p137 = scmp.ne.s32.totalorder %s129, %s132
      %p138 = scmp.eq.s32.totalorder %s13, 0
      %p139 = por %p137, %p138
      %p140 = scmp.ne.s32.totalorder %s129, %s132
      %p141 = scmp.eq.s32.totalorder %s18, 1
      %p142 = por %p140, %p141
      %p143 = scmp.ne.s32.totalorder %s132, %s133
      %p144 = scmp.eq.s32.totalorder %s18, 0
      %p145 = por %p143, %p144
      %p146 = scmp.ne.s32.totalorder %s132, %s133
      %p147 = scmp.eq.s32.totalorder %s19, 1
      %p148 = por %p146, %p147
      %p150 = scmp.ne.s32.totalorder %s133, %s149
      %p151 = scmp.eq.s32.totalorder %s19, 0
      %p152 = por %p150, %p151
      %s153 = ssub.s32 %s21, %s28
      %p154 = scmp.eq.s32.totalorder %s153, 0
      %s156 = sadd.s32 %s155, 1
      %s157 = scalar_select %p154, %s155, %s156
      %p160 = pneg %p154
      %p161 = scmp.eq.s32.totalorder %s13, 1
      %p162 = por %p160, %p161
      %p163 = scmp.ne.s32.totalorder %s155, %s158
      %p164 = scmp.eq.s32.totalorder %s13, 0
      %p165 = por %p163, %p164
      %p166 = scmp.ne.s32.totalorder %s155, %s158
      %p167 = scmp.eq.s32.totalorder %s18, 1
      %p168 = por %p166, %p167
      %p169 = scmp.ne.s32.totalorder %s158, %s159
      %p170 = scmp.eq.s32.totalorder %s18, 0
      %p171 = por %p169, %p170
      %p172 = scmp.ne.s32.totalorder %s158, %s159
      %p173 = scmp.eq.s32.totalorder %s19, 1
      %p174 = por %p172, %p173
      %p176 = scmp.ne.s32.totalorder %s159, %s175
      %p177 = scmp.eq.s32.totalorder %s19, 0
      %p178 = por %p176, %p177
      %s180 = sadd.s32 %s179, 1
      %p183 = scmp.eq.s32.totalorder %s13, 1
      %p184 = scmp.ne.s32.totalorder %s179, %s181
      %p185 = scmp.eq.s32.totalorder %s13, 0
      %p186 = por %p184, %p185
      %p187 = scmp.ne.s32.totalorder %s179, %s181
      %p188 = scmp.eq.s32.totalorder %s18, 1
      %p189 = por %p187, %p188
      %p190 = scmp.ne.s32.totalorder %s181, %s182
      %p191 = scmp.eq.s32.totalorder %s18, 0
      %p192 = por %p190, %p191
      %p193 = scmp.ne.s32.totalorder %s181, %s182
      %p194 = scmp.eq.s32.totalorder %s19, 1
      %p195 = por %p193, %p194
      %p197 = scmp.ne.s32.totalorder %s182, %s196
      %p198 = scmp.eq.s32.totalorder %s19, 0
      %p199 = por %p197, %p198
      %s200 = ssub.s32 %s20, %s32
      %p201 = scmp.eq.s32.totalorder %s200, 0
      %s203 = sadd.s32 %s202, 1
      %s204 = scalar_select %p201, %s202, %s203
      %p207 = pneg %p201
      %p208 = scmp.eq.s32.totalorder %s13, 1
      %p209 = por %p207, %p208
      %p210 = scmp.ne.s32.totalorder %s202, %s205
      %p211 = scmp.eq.s32.totalorder %s13, 0
      %p212 = por %p210, %p211
      %p213 = scmp.ne.s32.totalorder %s202, %s205
      %p214 = scmp.eq.s32.totalorder %s18, 1
      %p215 = por %p213, %p214
      %p216 = scmp.ne.s32.totalorder %s205, %s206
      %p217 = scmp.eq.s32.totalorder %s18, 0
      %p218 = por %p216, %p217
      %p219 = scmp.ne.s32.totalorder %s205, %s206
      %p220 = scmp.eq.s32.totalorder %s19, 1
      %p221 = por %p219, %p220
      %p223 = scmp.ne.s32.totalorder %s206, %s222
      %p224 = scmp.eq.s32.totalorder %s19, 0
      %p225 = por %p223, %p224
      %p226 = scmp.le.s32.totalorder 1, %s13
      %p227 = scmp.lt.s32.totalorder %s13, 3
      %p228 = pnand %p226, %p227
      %p229 = pneg %p228
      // Predicated region
      $region9: #{mlp_forward.1} parent=5 // pred_check
        _
      $region10: #{mlp_forward.1} parent=5 // pred_check_branch
        %231 = sbr.rel (%p228) target = $region12
      $region11: #{mlp_forward.1} parent=5 // pred_region
        %s232 = ssub.s32 %s13, 1
        // Predicated region
        $region13: #{mlp_forward.1} parent=11 // pred_check
          %p233 = pneg %p51
        $region14: #{mlp_forward.1} parent=11 // pred_check_branch
          %235 = sbr.rel (%p233) target = $region16
        $region15: #{mlp_forward.1} parent=11 // pred_region
          %s236 = smul.u32 16, %s22
          %p237 = scmp.lt.s32.totalorder %s236, 15
          %s238 = scalar_select %p237, %s236, 15
          %s239 = smul.addr %s238, 8
          %s240 = scalar_lea.vmem %s0, %s239
          %s241 = smul.u32 16, %s22
        $region16: #{mlp_forward.1} parent=11 // pred_fallthru
          _
        // Predicated region
        $region17: #{mlp_forward.1} parent=11 // pred_check
          %p242 = pneg %p72
        $region18: #{mlp_forward.1} parent=11 // pred_check_branch
          %244 = sbr.rel (%p242) target = $region20
        $region19: #{mlp_forward.1} parent=11 // pred_region
          _
        $region20: #{mlp_forward.1} parent=11 // pred_fallthru
          _
        // Predicated region
        $region21: #{mlp_forward.1} parent=11 // pred_check
          %p245 = pneg %p93
        $region22: #{mlp_forward.1} parent=11 // pred_check_branch
          %247 = sbr.rel (%p245) target = $region24
        $region23: #{mlp_forward.1} parent=11 // pred_region
          _
        $region24: #{mlp_forward.1} parent=11 // pred_fallthru
          _
        // Predicated region
        $region25: #{mlp_forward.1} parent=11 // pred_check
          %p248 = pneg %p192
        $region26: #{mlp_forward.1} parent=11 // pred_check_branch
          %250 = sbr.rel (%p248) target = $region28
        $region27: #{mlp_forward.1} parent=11 // pred_region
          _
        $region28: #{mlp_forward.1} parent=11 // pred_fallthru
          _
      $region12: #{mlp_forward.1} parent=5 // pred_fallthru
        _
      %p251 = scmp.lt.s32.totalorder %s13, 2
      // Predicated region
      $region29: #{mlp_forward.1} parent=5 // pred_check
        %p252 = pneg %p251
      $region30: #{mlp_forward.1} parent=5 // pred_check_branch
        %254 = sbr.rel (%p252) target = $region32
      $region31: #{mlp_forward.1} parent=5 // pred_region
        // Predicated region
        $region33: #{mlp_forward.1} parent=31 // pred_check
          %p255 = pneg %p113
        $region34: #{mlp_forward.1} parent=31 // pred_check_branch
          %257 = sbr.rel (%p255) target = $region36
        $region35: #{mlp_forward.1} parent=31 // pred_region
          %s258 = sand.u32 %s103, 1
          %s259 = sand.u32 %s103, 1
          %s260 = smul.addr %s259, 64
          %s261 = scalar_lea.vmem [#allocation4], %s260
          %s262 = smul.addr %s21, 4
          %s263 = scalar_lea.vmem %s3, %s262
          // Predicated region
          $region37: #{mlp_forward.1} parent=35 // pred_check
            _
          $region38: #{mlp_forward.1} parent=35 // pred_check_branch
            %265 = sbr.rel (0) target = $region40
          $region39: #{mlp_forward.1} parent=35 // pred_region
            // Predicated region
            $region41: #{mlp_forward.1} parent=39 // pred_check
              _
            $region42: #{mlp_forward.1} parent=39 // pred_check_branch
              %267 = sbr.rel target = $region44
            $region43: #{mlp_forward.1} parent=39 // pred_region
              // Predicated region
              $region56: #{mlp_forward.1} parent=43 // pred_check
                _
              $region57: #{mlp_forward.1} parent=43 // pred_check_branch
                %313 = sbr.rel (0) target = $region59
              $region58: #{mlp_forward.1} parent=43 // pred_region
                loop: start=0, step=1, limit=1
                $region60: #{mlp_forward.1} parent=58 // loop_pre_header
                  _
                $region61: #{mlp_forward.1} parent=58 // loop_header
                  %s315 = sphi 0, %s319
                  %p316 = scmp.ge.s32.totalorder %s315, 1
                  %s320 = sphi %s263, %s263
                  %s321 = sphi %s261, %s261
                $region62: #{mlp_forward.1} parent=58 // loop_header_branch
                  %318 = sbr.rel (%p316) target = $region66
                $region63: #{mlp_forward.1} parent=58 // loop_body
                  _
                $region64: #{mlp_forward.1} parent=58 // loop_footer
                  %s319 = sadd.s32 1, %s315
                $region65: #{mlp_forward.1} parent=58 // loop_footer_branch
                  %314 = sbr.rel target = $region61
                $region66: #{mlp_forward.1} parent=58 // loop_exit
                  _
                %s323 = ssub.s32 16, 1
                loop: start=0, step=1, limit=1
                $region67: #{mlp_forward.1} parent=58 // loop_pre_header
                  _
                $region68: #{mlp_forward.1} parent=58 // loop_header
                  %s325 = sphi 0, %s329
                  %p326 = scmp.ge.s32.totalorder %s325, 1
                  %s330 = sphi %s263, %s263
                  %s331 = sphi %s261, %s261
                $region69: #{mlp_forward.1} parent=58 // loop_header_branch
                  %328 = sbr.rel (%p326) target = $region73
                $region70: #{mlp_forward.1} parent=58 // loop_body
                  %v332 = vld [vmem:[%s330] sm:%s323]
                  %333 = vst [vmem:[%s331] sm:%s323] %v332
                  %v334 = vld [vmem:[%s330 + $0x8] sm:%s323]
                  %335 = vst [vmem:[%s331 + $0x4] sm:%s323] %v334
                  %v336 = vld [vmem:[%s330 + $0x10] sm:%s323]
                  %337 = vst [vmem:[%s331 + $0x8] sm:%s323] %v336
                  %v338 = vld [vmem:[%s330 + $0x18] sm:%s323]
                  %339 = vst [vmem:[%s331 + $0xc] sm:%s323] %v338
                  %v340 = vld [vmem:[%s330 + $0x20] sm:%s323]
                  %341 = vst [vmem:[%s331 + $0x10] sm:%s323] %v340
                  %v342 = vld [vmem:[%s330 + $0x28] sm:%s323]
                  %343 = vst [vmem:[%s331 + $0x14] sm:%s323] %v342
                  %v344 = vld [vmem:[%s330 + $0x30] sm:%s323]
                  %345 = vst [vmem:[%s331 + $0x18] sm:%s323] %v344
                  %v346 = vld [vmem:[%s330 + $0x38] sm:%s323]
                  %347 = vst [vmem:[%s331 + $0x1c] sm:%s323] %v346
                  %v348 = vld [vmem:[%s330 + $0x40] sm:%s323]
                  %349 = vst [vmem:[%s331 + $0x20] sm:%s323] %v348
                  %v350 = vld [vmem:[%s330 + $0x48] sm:%s323]
                  %351 = vst [vmem:[%s331 + $0x24] sm:%s323] %v350
                  %v352 = vld [vmem:[%s330 + $0x50] sm:%s323]
                  %353 = vst [vmem:[%s331 + $0x28] sm:%s323] %v352
                  %v354 = vld [vmem:[%s330 + $0x58] sm:%s323]
                  %355 = vst [vmem:[%s331 + $0x2c] sm:%s323] %v354
                  %v356 = vld [vmem:[%s330 + $0x60] sm:%s323]
                  %357 = vst [vmem:[%s331 + $0x30] sm:%s323] %v356
                  %v358 = vld [vmem:[%s330 + $0x68] sm:%s323]
                  %359 = vst [vmem:[%s331 + $0x34] sm:%s323] %v358
                  %v360 = vld [vmem:[%s330 + $0x70] sm:%s323]
                  %361 = vst [vmem:[%s331 + $0x38] sm:%s323] %v360
                  %v362 = vld [vmem:[%s330 + $0x78] sm:%s323]
                  %363 = vst [vmem:[%s331 + $0x3c] sm:%s323] %v362
                $region71: #{mlp_forward.1} parent=58 // loop_footer
                  %s329 = sadd.s32 1, %s325
                $region72: #{mlp_forward.1} parent=58 // loop_footer_branch
                  %324 = sbr.rel target = $region68
                $region73: #{mlp_forward.1} parent=58 // loop_exit
                  _
              $region59: #{mlp_forward.1} parent=43 // pred_fallthru
                _
            $region44: #{mlp_forward.1} parent=39 // pred_fallthru
              _
            // Predicated region
            $region45: #{mlp_forward.1} parent=39 // pred_check
              _
            $region46: #{mlp_forward.1} parent=39 // pred_check_branch
              %269 = sbr.rel (0) target = $region48
            $region47: #{mlp_forward.1} parent=39 // pred_region
              %s271 = ssub.s32 16, 1
              loop: start=0, step=1, limit=1
              $region49: #{mlp_forward.1} parent=47 // loop_pre_header
                _
              $region50: #{mlp_forward.1} parent=47 // loop_header
                %s273 = sphi 0, %s277
                %p274 = scmp.ge.s32.totalorder %s273, 1
                %s278 = sphi %s263, %s263
                %s279 = sphi %s261, %s261
              $region51: #{mlp_forward.1} parent=47 // loop_header_branch
                %276 = sbr.rel (%p274) target = $region55
              $region52: #{mlp_forward.1} parent=47 // loop_body
                %v280 = vld [vmem:[%s278] sm:%s271]
                %281 = vst [vmem:[%s279] sm:%s271] %v280
                %v282 = vld [vmem:[%s278 + $0x8] sm:%s271]
                %283 = vst [vmem:[%s279 + $0x4] sm:%s271] %v282
                %v284 = vld [vmem:[%s278 + $0x10] sm:%s271]
                %285 = vst [vmem:[%s279 + $0x8] sm:%s271] %v284
                %v286 = vld [vmem:[%s278 + $0x18] sm:%s271]
                %287 = vst [vmem:[%s279 + $0xc] sm:%s271] %v286
                %v288 = vld [vmem:[%s278 + $0x20] sm:%s271]
                %289 = vst [vmem:[%s279 + $0x10] sm:%s271] %v288
                %v290 = vld [vmem:[%s278 + $0x28] sm:%s271]
                %291 = vst [vmem:[%s279 + $0x14] sm:%s271] %v290
                %v292 = vld [vmem:[%s278 + $0x30] sm:%s271]
                %293 = vst [vmem:[%s279 + $0x18] sm:%s271] %v292
                %v294 = vld [vmem:[%s278 + $0x38] sm:%s271]
                %295 = vst [vmem:[%s279 + $0x1c] sm:%s271] %v294
                %v296 = vld [vmem:[%s278 + $0x40] sm:%s271]
                %297 = vst [vmem:[%s279 + $0x20] sm:%s271] %v296
                %v298 = vld [vmem:[%s278 + $0x48] sm:%s271]
                %299 = vst [vmem:[%s279 + $0x24] sm:%s271] %v298
                %v300 = vld [vmem:[%s278 + $0x50] sm:%s271]
                %301 = vst [vmem:[%s279 + $0x28] sm:%s271] %v300
                %v302 = vld [vmem:[%s278 + $0x58] sm:%s271]
                %303 = vst [vmem:[%s279 + $0x2c] sm:%s271] %v302
                %v304 = vld [vmem:[%s278 + $0x60] sm:%s271]
                %305 = vst [vmem:[%s279 + $0x30] sm:%s271] %v304
                %v306 = vld [vmem:[%s278 + $0x68] sm:%s271]
                %307 = vst [vmem:[%s279 + $0x34] sm:%s271] %v306
                %v308 = vld [vmem:[%s278 + $0x70] sm:%s271]
                %309 = vst [vmem:[%s279 + $0x38] sm:%s271] %v308
                %v310 = vld [vmem:[%s278 + $0x78] sm:%s271]
                %311 = vst [vmem:[%s279 + $0x3c] sm:%s271] %v310
              $region53: #{mlp_forward.1} parent=47 // loop_footer
                %s277 = sadd.s32 1, %s273
              $region54: #{mlp_forward.1} parent=47 // loop_footer_branch
                %272 = sbr.rel target = $region50
              $region55: #{mlp_forward.1} parent=47 // loop_exit
                _
            $region48: #{mlp_forward.1} parent=39 // pred_fallthru
              _
          $region40: #{mlp_forward.1} parent=35 // pred_fallthru
            _
          %364 = vnop
        $region36: #{mlp_forward.1} parent=31 // pred_fallthru
          _
        // Predicated region
        $region74: #{mlp_forward.1} parent=31 // pred_check
          %p365 = pneg %p139
        $region75: #{mlp_forward.1} parent=31 // pred_check_branch
          %367 = sbr.rel (%p365) target = $region77
        $region76: #{mlp_forward.1} parent=31 // pred_region
          %p368 = scmp.lt.s32.totalorder %s21, 1
          %s369 = scalar_select %p368, %s21, 1
          %s370 = scalar_lea.vmem %s4, %s369
        $region77: #{mlp_forward.1} parent=31 // pred_fallthru
          _
        // Predicated region
        $region78: #{mlp_forward.1} parent=31 // pred_check
          %p371 = pneg %p165
        $region79: #{mlp_forward.1} parent=31 // pred_check_branch
          %373 = sbr.rel (%p371) target = $region81
        $region80: #{mlp_forward.1} parent=31 // pred_region
          %s374 = smul.u32 16, %s21
          %p375 = scmp.lt.s32.totalorder %s374, 31
          %s376 = scalar_select %p375, %s374, 31
          %s377 = smul.addr %s376, 4
          %s378 = scalar_lea.vmem %s5, %s377
          %s379 = smul.u32 16, %s21
        $region81: #{mlp_forward.1} parent=31 // pred_fallthru
          _
      $region32: #{mlp_forward.1} parent=5 // pred_fallthru
        _
      %p380 = scmp.le.s32.totalorder 1, %s13
      %p381 = scmp.lt.s32.totalorder %s13, 3
      %p382 = pnand %p380, %p381
      %p383 = pneg %p382
      // Predicated region
      $region82: #{mlp_forward.1} parent=5 // pred_check
        _
      $region83: #{mlp_forward.1} parent=5 // pred_check_branch
        %385 = sbr.rel (%p382) target = $region85
      $region84: #{mlp_forward.1} parent=5 // pred_region
        %s386 = ssub.s32 %s13, 1
        %s387 = sand.u32 %s106, 1
        %s388 = sand.u32 %s106, 1
        %s389 = smul.addr %s388, 64
        %s390 = scalar_lea.vmem [#allocation4], %s389
        // Predicated region
        $region86: #{mlp_forward.1} parent=84 // pred_check
          %p391 = pneg %p119
        $region87: #{mlp_forward.1} parent=84 // pred_check_branch
          %393 = sbr.rel (%p391) target = $region89
        $region88: #{mlp_forward.1} parent=84 // pred_region
          _
        $region89: #{mlp_forward.1} parent=84 // pred_fallthru
          _
        %s394 = smul.u32 16, %s22
        %p395 = scmp.lt.s32.totalorder %s394, 15
        %s396 = scalar_select %p395, %s394, 15
        %s397 = smul.addr %s396, 8
        %s398 = scalar_lea.vmem %s0, %s397
        %p399 = pneg %p51
        %p400 = pneg %p48
        %p401 = pneg %p72
        %p402 = pneg %p69
        %p403 = pneg %p93
        %p404 = pneg %p90
        %s405 = sand.u32 %s106, 1
        %s406 = sand.u32 %s106, 1
        %s407 = smul.addr %s406, 64
        %s408 = scalar_lea.vmem [#allocation4], %s407
        %p409 = pneg %p119
        %p410 = pneg %p116
        %p411 = scmp.lt.s32.totalorder %s23, 1
        %s412 = scalar_select %p411, %s23, 1
        %s413 = scalar_lea.vmem %s4, %s412
        %p414 = pneg %p145
        %p415 = pneg %p142
        %s416 = smul.u32 16, %s23
        %p417 = scmp.lt.s32.totalorder %s416, 31
        %s418 = scalar_select %p417, %s416, 31
        %s419 = smul.addr %s418, 4
        %s420 = scalar_lea.vmem %s5, %s419
        %p421 = pneg %p171
        %p422 = pneg %p168
        %p423 = pneg %p192
        %p424 = pneg %p189
        %p425 = pneg %p218
        %p426 = pneg %p215
        %s427 = smul.u32 16, %s22
        %p428 = scmp.lt.s32.totalorder %s427, 15
        %s429 = scalar_select %p428, %s427, 15
        %s430 = smul.addr %s429, 8
        %s431 = scalar_lea.vmem %s7, %s430
        %s432 = smul.u32 16, %s22
        %p433 = scmp.lt.s32.totalorder %s432, 15
        %s434 = scalar_select %p433, %s432, 15
        %s435 = smul.addr %s434, 8
        %s436 = scalar_lea.vmem %s0, %s435
        %s437 = smul.u32 16, %s22
        %p438 = scmp.lt.s32.totalorder %s23, 1
        %s439 = scalar_select %p438, %s23, 1
        %s440 = scalar_lea.vmem %s4, %s439
        %s441 = smul.u32 16, %s23
        %p442 = scmp.lt.s32.totalorder %s441, 31
        %s443 = scalar_select %p442, %s441, 31
        %s444 = smul.addr %s443, 4
        %s445 = scalar_lea.vmem %s5, %s444
        %s446 = smul.u32 16, %s23
        %s447 = smul.u32 16, %s22
        %p448 = scmp.lt.s32.totalorder %s447, 15
        %s449 = scalar_select %p448, %s447, 15
        %s450 = smul.addr %s449, 8
        %s451 = scalar_lea.vmem %s7, %s450
        %s452 = smul.u32 16, %s22
        %p453 = scmp.eq.s32.totalorder %s23, 0
        // Predicated region
        $region90: #{mlp_forward.1} parent=84 // pred_check
          %p454 = pneg %p453
        $region91: #{mlp_forward.1} parent=84 // pred_check_branch
          %456 = sbr.rel (%p454) target = $region93
        $region92: #{mlp_forward.1} parent=84 // pred_region
          %v457 = vld [vmem:[%s436] sm:$0xff]
          %v458 = vld [vmem:[%s436 + $0x8] sm:$0xff]
          %v459 = vld [vmem:[%s436 + $0x10] sm:$0xff]
          %v460 = vld [vmem:[%s436 + $0x18] sm:$0xff]
          %v461 = vld [vmem:[%s436 + $0x20] sm:$0xff]
          %v462 = vld [vmem:[%s436 + $0x28] sm:$0xff]
          %v463 = vld [vmem:[%s436 + $0x30] sm:$0xff]
          %v464 = vld [vmem:[%s436 + $0x38] sm:$0xff]
          %v465 = vld [vmem:[%s436 + $0x40] sm:$0xff]
          %v466 = vld [vmem:[%s436 + $0x48] sm:$0xff]
          %v467 = vld [vmem:[%s436 + $0x50] sm:$0xff]
          %v468 = vld [vmem:[%s436 + $0x58] sm:$0xff]
          %v469 = vld [vmem:[%s436 + $0x60] sm:$0xff]
          %v470 = vld [vmem:[%s436 + $0x68] sm:$0xff]
          %v471 = vld [vmem:[%s436 + $0x70] sm:$0xff]
          %v472 = vld [vmem:[%s436 + $0x78] sm:$0xff]
          %473 = vadd.xlane.f32.xlu0 %v457
          %v474 = vpop.xlane.xlu0 %473
          %475 = vadd.xlane.f32.xlu0 %v458
          %v476 = vpop.xlane.xlu0 %475
          %477 = vadd.xlane.f32.xlu0 %v459
          %v478 = vpop.xlane.xlu0 %477
          %479 = vadd.xlane.f32.xlu0 %v460
          %v480 = vpop.xlane.xlu0 %479
          %481 = vadd.xlane.f32.xlu0 %v461
          %v482 = vpop.xlane.xlu0 %481
          %483 = vadd.xlane.f32.xlu0 %v462
          %v484 = vpop.xlane.xlu0 %483
          %485 = vadd.xlane.f32.xlu0 %v463
          %v486 = vpop.xlane.xlu0 %485
          %487 = vadd.xlane.f32.xlu0 %v464
          %v488 = vpop.xlane.xlu0 %487
          %489 = vadd.xlane.f32.xlu0 %v465
          %v490 = vpop.xlane.xlu0 %489
          %491 = vadd.xlane.f32.xlu0 %v466
          %v492 = vpop.xlane.xlu0 %491
          %493 = vadd.xlane.f32.xlu0 %v467
          %v494 = vpop.xlane.xlu0 %493
          %495 = vadd.xlane.f32.xlu0 %v468
          %v496 = vpop.xlane.xlu0 %495
          %497 = vadd.xlane.f32.xlu0 %v469
          %v498 = vpop.xlane.xlu0 %497
          %499 = vadd.xlane.f32.xlu0 %v470
          %v500 = vpop.xlane.xlu0 %499
          %501 = vadd.xlane.f32.xlu0 %v471
          %v502 = vpop.xlane.xlu0 %501
          %503 = vadd.xlane.f32.xlu0 %v472
          %v504 = vpop.xlane.xlu0 %503
          %v505 = vrcp.pop 128.0
          %v506 = vmul.f32 128.0, %v505
          %v507 = vsub.f32 1.0, %v506
          %v508 = vmul.f32 %v505, %v507
          %v509 = vadd.f32 %v505, %v508
          %vm510 = vweird.f32 %v505
          %v511 = vsel %vm510, %v505, %v509
          %v512 = vmul.f32 %v474, %v511
          %v513 = vmul.f32 %v476, %v511
          %v514 = vmul.f32 %v478, %v511
          %v515 = vmul.f32 %v480, %v511
          %v516 = vmul.f32 %v482, %v511
          %v517 = vmul.f32 %v484, %v511
          %v518 = vmul.f32 %v486, %v511
          %v519 = vmul.f32 %v488, %v511
          %v520 = vmul.f32 %v490, %v511
          %v521 = vmul.f32 %v492, %v511
          %v522 = vmul.f32 %v494, %v511
          %v523 = vmul.f32 %v496, %v511
          %v524 = vmul.f32 %v498, %v511
          %v525 = vmul.f32 %v500, %v511
          %v526 = vmul.f32 %v502, %v511
          %v527 = vmul.f32 %v504, %v511
          %v528 = vsub.f32 %v457, %v512
          %v529 = vsub.f32 %v458, %v513
          %v530 = vsub.f32 %v459, %v514
          %v531 = vsub.f32 %v460, %v515
          %v532 = vsub.f32 %v461, %v516
          %v533 = vsub.f32 %v462, %v517
          %v534 = vsub.f32 %v463, %v518
          %v535 = vsub.f32 %v464, %v519
          %v536 = vsub.f32 %v465, %v520
          %v537 = vsub.f32 %v466, %v521
          %v538 = vsub.f32 %v467, %v522
          %v539 = vsub.f32 %v468, %v523
          %v540 = vsub.f32 %v469, %v524
          %v541 = vsub.f32 %v470, %v525
          %v542 = vsub.f32 %v471, %v526
          %v543 = vsub.f32 %v472, %v527
          %v544 = vmul.f32 %v528, %v528
          %v545 = vmul.f32 %v529, %v529
          %v546 = vmul.f32 %v530, %v530
          %v547 = vmul.f32 %v531, %v531
          %v548 = vmul.f32 %v532, %v532
          %v549 = vmul.f32 %v533, %v533
          %v550 = vmul.f32 %v534, %v534
          %v551 = vmul.f32 %v535, %v535
          %v552 = vmul.f32 %v536, %v536
          %v553 = vmul.f32 %v537, %v537
          %v554 = vmul.f32 %v538, %v538
          %v555 = vmul.f32 %v539, %v539
          %v556 = vmul.f32 %v540, %v540
          %v557 = vmul.f32 %v541, %v541
          %v558 = vmul.f32 %v542, %v542
          %v559 = vmul.f32 %v543, %v543
          %560 = vadd.xlane.f32.xlu0 %v544
          %v561 = vpop.xlane.xlu0 %560
          %562 = vadd.xlane.f32.xlu0 %v545
          %v563 = vpop.xlane.xlu0 %562
          %564 = vadd.xlane.f32.xlu0 %v546
          %v565 = vpop.xlane.xlu0 %564
          %566 = vadd.xlane.f32.xlu0 %v547
          %v567 = vpop.xlane.xlu0 %566
          %568 = vadd.xlane.f32.xlu0 %v548
          %v569 = vpop.xlane.xlu0 %568
          %570 = vadd.xlane.f32.xlu0 %v549
          %v571 = vpop.xlane.xlu0 %570
          %572 = vadd.xlane.f32.xlu0 %v550
          %v573 = vpop.xlane.xlu0 %572
          %574 = vadd.xlane.f32.xlu0 %v551
          %v575 = vpop.xlane.xlu0 %574
          %576 = vadd.xlane.f32.xlu0 %v552
          %v577 = vpop.xlane.xlu0 %576
          %578 = vadd.xlane.f32.xlu0 %v553
          %v579 = vpop.xlane.xlu0 %578
          %580 = vadd.xlane.f32.xlu0 %v554
          %v581 = vpop.xlane.xlu0 %580
          %582 = vadd.xlane.f32.xlu0 %v555
          %v583 = vpop.xlane.xlu0 %582
          %584 = vadd.xlane.f32.xlu0 %v556
          %v585 = vpop.xlane.xlu0 %584
          %586 = vadd.xlane.f32.xlu0 %v557
          %v587 = vpop.xlane.xlu0 %586
          %588 = vadd.xlane.f32.xlu0 %v558
          %v589 = vpop.xlane.xlu0 %588
          %590 = vadd.xlane.f32.xlu0 %v559
          %v591 = vpop.xlane.xlu0 %590
          %v592 = vmul.f32 %v561, %v511
          %v593 = vmul.f32 %v563, %v511
          %v594 = vmul.f32 %v565, %v511
          %v595 = vmul.f32 %v567, %v511
          %v596 = vmul.f32 %v569, %v511
          %v597 = vmul.f32 %v571, %v511
          %v598 = vmul.f32 %v573, %v511
          %v599 = vmul.f32 %v575, %v511
          %v600 = vmul.f32 %v577, %v511
          %v601 = vmul.f32 %v579, %v511
          %v602 = vmul.f32 %v581, %v511
          %v603 = vmul.f32 %v583, %v511
          %v604 = vmul.f32 %v585, %v511
          %v605 = vmul.f32 %v587, %v511
          %v606 = vmul.f32 %v589, %v511
          %v607 = vmul.f32 %v591, %v511
          %v608 = vadd.f32 %v592, 1e-05
          %v609 = vadd.f32 %v593, 1e-05
          %v610 = vadd.f32 %v594, 1e-05
          %v611 = vadd.f32 %v595, 1e-05
          %v612 = vadd.f32 %v596, 1e-05
          %v613 = vadd.f32 %v597, 1e-05
          %v614 = vadd.f32 %v598, 1e-05
          %v615 = vadd.f32 %v599, 1e-05
          %v616 = vadd.f32 %v600, 1e-05
          %v617 = vadd.f32 %v601, 1e-05
          %v618 = vadd.f32 %v602, 1e-05
          %v619 = vadd.f32 %v603, 1e-05
          %v620 = vadd.f32 %v604, 1e-05
          %v621 = vadd.f32 %v605, 1e-05
          %v622 = vadd.f32 %v606, 1e-05
          %v623 = vadd.f32 %v607, 1e-05
          %v624 = vrsqrt.pop %v608
          %v625 = vmul.f32 %v624, %v608
          %v626 = vmul.f32 %v625, %v624
          %v627 = vmul.f32 0.5, %v626
          %v628 = vsub.f32 1.5, %v627
          %v629 = vmul.f32 %v624, %v628
          %vm630 = vweird.f32 %v608
          %vm631 = vweird.f32 %v624
          %vm632 = vmor %vm630, %vm631
          %v633 = vsel %vm632, %v624, %v629
          %v634 = vrsqrt.pop %v609
          %v635 = vmul.f32 %v634, %v609
          %v636 = vmul.f32 %v635, %v634
          %v637 = vmul.f32 0.5, %v636
          %v638 = vsub.f32 1.5, %v637
          %v639 = vmul.f32 %v634, %v638
          %vm640 = vweird.f32 %v609
          %vm641 = vweird.f32 %v634
          %vm642 = vmor %vm640, %vm641
          %v643 = vsel %vm642, %v634, %v639
          %v644 = vrsqrt.pop %v610
          %v645 = vmul.f32 %v644, %v610
          %v646 = vmul.f32 %v645, %v644
          %v647 = vmul.f32 0.5, %v646
          %v648 = vsub.f32 1.5, %v647
          %v649 = vmul.f32 %v644, %v648
          %vm650 = vweird.f32 %v610
          %vm651 = vweird.f32 %v644
          %vm652 = vmor %vm650, %vm651
          %v653 = vsel %vm652, %v644, %v649
          %v654 = vrsqrt.pop %v611
          %v655 = vmul.f32 %v654, %v611
          %v656 = vmul.f32 %v655, %v654
          %v657 = vmul.f32 0.5, %v656
          %v658 = vsub.f32 1.5, %v657
          %v659 = vmul.f32 %v654, %v658
          %vm660 = vweird.f32 %v611
          %vm661 = vweird.f32 %v654
          %vm662 = vmor %vm660, %vm661
          %v663 = vsel %vm662, %v654, %v659
          %v664 = vrsqrt.pop %v612
          %v665 = vmul.f32 %v664, %v612
          %v666 = vmul.f32 %v665, %v664
          %v667 = vmul.f32 0.5, %v666
          %v668 = vsub.f32 1.5, %v667
          %v669 = vmul.f32 %v664, %v668
          %vm670 = vweird.f32 %v612
          %vm671 = vweird.f32 %v664
          %vm672 = vmor %vm670, %vm671
          %v673 = vsel %vm672, %v664, %v669
          %v674 = vrsqrt.pop %v613
          %v675 = vmul.f32 %v674, %v613
          %v676 = vmul.f32 %v675, %v674
          %v677 = vmul.f32 0.5, %v676
          %v678 = vsub.f32 1.5, %v677
          %v679 = vmul.f32 %v674, %v678
          %vm680 = vweird.f32 %v613
          %vm681 = vweird.f32 %v674
          %vm682 = vmor %vm680, %vm681
          %v683 = vsel %vm682, %v674, %v679
          %v684 = vrsqrt.pop %v614
          %v685 = vmul.f32 %v684, %v614
          %v686 = vmul.f32 %v685, %v684
          %v687 = vmul.f32 0.5, %v686
          %v688 = vsub.f32 1.5, %v687
          %v689 = vmul.f32 %v684, %v688
          %vm690 = vweird.f32 %v614
          %vm691 = vweird.f32 %v684
          %vm692 = vmor %vm690, %vm691
          %v693 = vsel %vm692, %v684, %v689
          %v694 = vrsqrt.pop %v615
          %v695 = vmul.f32 %v694, %v615
          %v696 = vmul.f32 %v695, %v694
          %v697 = vmul.f32 0.5, %v696
          %v698 = vsub.f32 1.5, %v697
          %v699 = vmul.f32 %v694, %v698
          %vm700 = vweird.f32 %v615
          %vm701 = vweird.f32 %v694
          %vm702 = vmor %vm700, %vm701
          %v703 = vsel %vm702, %v694, %v699
          %v704 = vrsqrt.pop %v616
          %v705 = vmul.f32 %v704, %v616
          %v706 = vmul.f32 %v705, %v704
          %v707 = vmul.f32 0.5, %v706
          %v708 = vsub.f32 1.5, %v707
          %v709 = vmul.f32 %v704, %v708
          %vm710 = vweird.f32 %v616
          %vm711 = vweird.f32 %v704
          %vm712 = vmor %vm710, %vm711
          %v713 = vsel %vm712, %v704, %v709
          %v714 = vrsqrt.pop %v617
          %v715 = vmul.f32 %v714, %v617
          %v716 = vmul.f32 %v715, %v714
          %v717 = vmul.f32 0.5, %v716
          %v718 = vsub.f32 1.5, %v717
          %v719 = vmul.f32 %v714, %v718
          %vm720 = vweird.f32 %v617
          %vm721 = vweird.f32 %v714
          %vm722 = vmor %vm720, %vm721
          %v723 = vsel %vm722, %v714, %v719
          %v724 = vrsqrt.pop %v618
          %v725 = vmul.f32 %v724, %v618
          %v726 = vmul.f32 %v725, %v724
          %v727 = vmul.f32 0.5, %v726
          %v728 = vsub.f32 1.5, %v727
          %v729 = vmul.f32 %v724, %v728
          %vm730 = vweird.f32 %v618
          %vm731 = vweird.f32 %v724
          %vm732 = vmor %vm730, %vm731
          %v733 = vsel %vm732, %v724, %v729
          %v734 = vrsqrt.pop %v619
          %v735 = vmul.f32 %v734, %v619
          %v736 = vmul.f32 %v735, %v734
          %v737 = vmul.f32 0.5, %v736
          %v738 = vsub.f32 1.5, %v737
          %v739 = vmul.f32 %v734, %v738
          %vm740 = vweird.f32 %v619
          %vm741 = vweird.f32 %v734
          %vm742 = vmor %vm740, %vm741
          %v743 = vsel %vm742, %v734, %v739
          %v744 = vrsqrt.pop %v620
          %v745 = vmul.f32 %v744, %v620
          %v746 = vmul.f32 %v745, %v744
          %v747 = vmul.f32 0.5, %v746
          %v748 = vsub.f32 1.5, %v747
          %v749 = vmul.f32 %v744, %v748
          %vm750 = vweird.f32 %v620
          %vm751 = vweird.f32 %v744
          %vm752 = vmor %vm750, %vm751
          %v753 = vsel %vm752, %v744, %v749
          %v754 = vrsqrt.pop %v621
          %v755 = vmul.f32 %v754, %v621
          %v756 = vmul.f32 %v755, %v754
          %v757 = vmul.f32 0.5, %v756
          %v758 = vsub.f32 1.5, %v757
          %v759 = vmul.f32 %v754, %v758
          %vm760 = vweird.f32 %v621
          %vm761 = vweird.f32 %v754
          %vm762 = vmor %vm760, %vm761
          %v763 = vsel %vm762, %v754, %v759
          %v764 = vrsqrt.pop %v622
          %v765 = vmul.f32 %v764, %v622
          %v766 = vmul.f32 %v765, %v764
          %v767 = vmul.f32 0.5, %v766
          %v768 = vsub.f32 1.5, %v767
          %v769 = vmul.f32 %v764, %v768
          %vm770 = vweird.f32 %v622
          %vm771 = vweird.f32 %v764
          %vm772 = vmor %vm770, %vm771
          %v773 = vsel %vm772, %v764, %v769
          %v774 = vrsqrt.pop %v623
          %v775 = vmul.f32 %v774, %v623
          %v776 = vmul.f32 %v775, %v774
          %v777 = vmul.f32 0.5, %v776
          %v778 = vsub.f32 1.5, %v777
          %v779 = vmul.f32 %v774, %v778
          %vm780 = vweird.f32 %v623
          %vm781 = vweird.f32 %v774
          %vm782 = vmor %vm780, %vm781
          %v783 = vsel %vm782, %v774, %v779
          %v784 = vmul.f32 %v528, %v633
          %v785 = vmul.f32 %v529, %v643
          %v786 = vmul.f32 %v530, %v653
          %v787 = vmul.f32 %v531, %v663
          %v788 = vmul.f32 %v532, %v673
          %v789 = vmul.f32 %v533, %v683
          %v790 = vmul.f32 %v534, %v693
          %v791 = vmul.f32 %v535, %v703
          %v792 = vmul.f32 %v536, %v713
          %v793 = vmul.f32 %v537, %v723
          %v794 = vmul.f32 %v538, %v733
          %v795 = vmul.f32 %v539, %v743
          %v796 = vmul.f32 %v540, %v753
          %v797 = vmul.f32 %v541, %v763
          %v798 = vmul.f32 %v542, %v773
          %v799 = vmul.f32 %v543, %v783
          %v800 = vld [vmem:[%s1] sm:$0x1]
          %v802 = vperm.slane %v800, 0
          %v804 = vmul.f32 %v784, %v802
          %v805 = vmul.f32 %v785, %v802
          %v806 = vmul.f32 %v786, %v802
          %v807 = vmul.f32 %v787, %v802
          %v808 = vmul.f32 %v788, %v802
          %v809 = vmul.f32 %v789, %v802
          %v810 = vmul.f32 %v790, %v802
          %v811 = vmul.f32 %v791, %v802
          %v812 = vmul.f32 %v792, %v802
          %v813 = vmul.f32 %v793, %v802
          %v814 = vmul.f32 %v794, %v802
          %v815 = vmul.f32 %v795, %v802
          %v816 = vmul.f32 %v796, %v802
          %v817 = vmul.f32 %v797, %v802
          %v818 = vmul.f32 %v798, %v802
          %v819 = vmul.f32 %v799, %v802
          %v820 = vld [vmem:[%s2] sm:$0x1]
          %v822 = vperm.slane %v820, 0
          %v824 = vadd.f32 %v804, %v822
          %v825 = vadd.f32 %v805, %v822
          %v826 = vadd.f32 %v806, %v822
          %v827 = vadd.f32 %v807, %v822
          %v828 = vadd.f32 %v808, %v822
          %v829 = vadd.f32 %v809, %v822
          %v830 = vadd.f32 %v810, %v822
          %v831 = vadd.f32 %v811, %v822
          %v832 = vadd.f32 %v812, %v822
          %v833 = vadd.f32 %v813, %v822
          %v834 = vadd.f32 %v814, %v822
          %v835 = vadd.f32 %v815, %v822
          %v836 = vadd.f32 %v816, %v822
          %v837 = vadd.f32 %v817, %v822
          %v838 = vadd.f32 %v818, %v822
          %v839 = vadd.f32 %v819, %v822
          %v840 = vpack.c.bf16 %v824, %v824
          %v841 = vpack.c.bf16 %v825, %v825
          %v842 = vpack.c.bf16 %v826, %v826
          %v843 = vpack.c.bf16 %v827, %v827
          %v844 = vpack.c.bf16 %v828, %v828
          %v845 = vpack.c.bf16 %v829, %v829
          %v846 = vpack.c.bf16 %v830, %v830
          %v847 = vpack.c.bf16 %v831, %v831
          %v848 = vpack.c.bf16 %v832, %v832
          %v849 = vpack.c.bf16 %v833, %v833
          %v850 = vpack.c.bf16 %v834, %v834
          %v851 = vpack.c.bf16 %v835, %v835
          %v852 = vpack.c.bf16 %v836, %v836
          %v853 = vpack.c.bf16 %v837, %v837
          %v854 = vpack.c.bf16 %v838, %v838
          %v855 = vpack.c.bf16 %v839, %v839
          %856 = vst [vmem:[#allocation2] sm:$0xf] %v840
          %857 = vst [vmem:[#allocation2 + $0x4] sm:$0xf] %v841
          %858 = vst [vmem:[#allocation2 + $0x8] sm:$0xf] %v842
          %859 = vst [vmem:[#allocation2 + $0xc] sm:$0xf] %v843
          %860 = vst [vmem:[#allocation2 + $0x10] sm:$0xf] %v844
          %861 = vst [vmem:[#allocation2 + $0x14] sm:$0xf] %v845
          %862 = vst [vmem:[#allocation2 + $0x18] sm:$0xf] %v846
          %863 = vst [vmem:[#allocation2 + $0x1c] sm:$0xf] %v847
          %864 = vst [vmem:[#allocation2 + $0x20] sm:$0xf] %v848
          %865 = vst [vmem:[#allocation2 + $0x24] sm:$0xf] %v849
          %866 = vst [vmem:[#allocation2 + $0x28] sm:$0xf] %v850
          %867 = vst [vmem:[#allocation2 + $0x2c] sm:$0xf] %v851
          %868 = vst [vmem:[#allocation2 + $0x30] sm:$0xf] %v852
          %869 = vst [vmem:[#allocation2 + $0x34] sm:$0xf] %v853
          %870 = vst [vmem:[#allocation2 + $0x38] sm:$0xf] %v854
          %871 = vst [vmem:[#allocation2 + $0x3c] sm:$0xf] %v855
          %872 = vst [vmem:[#allocation3] sm:$0xff] 0.0
          %873 = vst [vmem:[#allocation3 + $0x8] sm:$0xff] 0.0
          %874 = vst [vmem:[#allocation3 + $0x10] sm:$0xff] 0.0
          %875 = vst [vmem:[#allocation3 + $0x18] sm:$0xff] 0.0
          %876 = vst [vmem:[#allocation3 + $0x20] sm:$0xff] 0.0
          %877 = vst [vmem:[#allocation3 + $0x28] sm:$0xff] 0.0
          %878 = vst [vmem:[#allocation3 + $0x30] sm:$0xff] 0.0
          %879 = vst [vmem:[#allocation3 + $0x38] sm:$0xff] 0.0
          %880 = vst [vmem:[#allocation3 + $0x40] sm:$0xff] 0.0
          %881 = vst [vmem:[#allocation3 + $0x48] sm:$0xff] 0.0
          %882 = vst [vmem:[#allocation3 + $0x50] sm:$0xff] 0.0
          %883 = vst [vmem:[#allocation3 + $0x58] sm:$0xff] 0.0
          %884 = vst [vmem:[#allocation3 + $0x60] sm:$0xff] 0.0
          %885 = vst [vmem:[#allocation3 + $0x68] sm:$0xff] 0.0
          %886 = vst [vmem:[#allocation3 + $0x70] sm:$0xff] 0.0
          %887 = vst [vmem:[#allocation3 + $0x78] sm:$0xff] 0.0
        $region93: #{mlp_forward.1} parent=84 // pred_fallthru
          _
        %v888 = vld [vmem:[#allocation2] sm:$0xf]
        %v889 = vld [vmem:[#allocation2 + $0x4] sm:$0xf]
        %v890 = vld [vmem:[#allocation2 + $0x8] sm:$0xf]
        %v891 = vld [vmem:[#allocation2 + $0xc] sm:$0xf]
        %v892 = vld [vmem:[#allocation2 + $0x10] sm:$0xf]
        %v893 = vld [vmem:[#allocation2 + $0x14] sm:$0xf]
        %v894 = vld [vmem:[#allocation2 + $0x18] sm:$0xf]
        %v895 = vld [vmem:[#allocation2 + $0x1c] sm:$0xf]
        %v896 = vld [vmem:[#allocation2 + $0x20] sm:$0xf]
        %v897 = vld [vmem:[#allocation2 + $0x24] sm:$0xf]
        %v898 = vld [vmem:[#allocation2 + $0x28] sm:$0xf]
        %v899 = vld [vmem:[#allocation2 + $0x2c] sm:$0xf]
        %v900 = vld [vmem:[#allocation2 + $0x30] sm:$0xf]
        %v901 = vld [vmem:[#allocation2 + $0x34] sm:$0xf]
        %v902 = vld [vmem:[#allocation2 + $0x38] sm:$0xf]
        %v903 = vld [vmem:[#allocation2 + $0x3c] sm:$0xf]
        %v904 = vld [vmem:[%s390] sm:$0xf]
        %v905 = vld [vmem:[%s390 + $0x4] sm:$0xf]
        %v906 = vld [vmem:[%s390 + $0x8] sm:$0xf]
        %v907 = vld [vmem:[%s390 + $0xc] sm:$0xf]
        %v908 = vld [vmem:[%s390 + $0x10] sm:$0xf]
        %v909 = vld [vmem:[%s390 + $0x14] sm:$0xf]
        %v910 = vld [vmem:[%s390 + $0x18] sm:$0xf]
        %v911 = vld [vmem:[%s390 + $0x1c] sm:$0xf]
        %v912 = vld [vmem:[%s390 + $0x20] sm:$0xf]
        %v913 = vld [vmem:[%s390 + $0x24] sm:$0xf]
        %v914 = vld [vmem:[%s390 + $0x28] sm:$0xf]
        %v915 = vld [vmem:[%s390 + $0x2c] sm:$0xf]
        %v916 = vld [vmem:[%s390 + $0x30] sm:$0xf]
        %v917 = vld [vmem:[%s390 + $0x34] sm:$0xf]
        %v918 = vld [vmem:[%s390 + $0x38] sm:$0xf]
        %v919 = vld [vmem:[%s390 + $0x3c] sm:$0xf]
        %v920 = vld [vmem:[%s440] sm:$0x1]
        %v922 = vperm.slane %v920, 0
        %v940 = vunpack.c.l.b16 %v888
        %v941 = vunpack.c.l.b16 %v889
        %v942 = vunpack.c.l.b16 %v890
        %v943 = vunpack.c.l.b16 %v891
        %v944 = vunpack.c.l.b16 %v892
        %v945 = vunpack.c.l.b16 %v893
        %v946 = vunpack.c.l.b16 %v894
        %v947 = vunpack.c.l.b16 %v895
        %v948 = vunpack.c.l.b16 %v896
        %v949 = vunpack.c.l.b16 %v897
        %v950 = vunpack.c.l.b16 %v898
        %v951 = vunpack.c.l.b16 %v899
        %v952 = vunpack.c.l.b16 %v900
        %v953 = vunpack.c.l.b16 %v901
        %v954 = vunpack.c.l.b16 %v902
        %v955 = vunpack.c.l.b16 %v903
        %v956 = vpack.c.b16 %v941, %v940
        %v957 = vpack.c.b16 %v943, %v942
        %v958 = vpack.c.b16 %v945, %v944
        %v959 = vpack.c.b16 %v947, %v946
        %v960 = vpack.c.b16 %v949, %v948
        %v961 = vpack.c.b16 %v951, %v950
        %v962 = vpack.c.b16 %v953, %v952
        %v963 = vpack.c.b16 %v955, %v954
        %v988 = vunpack.c.l.b16 %v904
        %v989 = vunpack.c.l.b16 %v905
        %v990 = vunpack.c.l.b16 %v906
        %v991 = vunpack.c.l.b16 %v907
        %v992 = vunpack.c.l.b16 %v908
        %v993 = vunpack.c.l.b16 %v909
        %v994 = vunpack.c.l.b16 %v910
        %v995 = vunpack.c.l.b16 %v911
        %v996 = vunpack.c.l.b16 %v912
        %v997 = vunpack.c.l.b16 %v913
        %v998 = vunpack.c.l.b16 %v914
        %v999 = vunpack.c.l.b16 %v915
        %v1000 = vunpack.c.l.b16 %v916
        %v1001 = vunpack.c.l.b16 %v917
        %v1002 = vunpack.c.l.b16 %v918
        %v1003 = vunpack.c.l.b16 %v919
        %v1004 = vpack.c.b16 %v989, %v988
        %v1005 = vpack.c.b16 %v991, %v990
        %v1006 = vpack.c.b16 %v993, %v992
        %v1007 = vpack.c.b16 %v995, %v994
        %v1008 = vpack.c.b16 %v997, %v996
        %v1009 = vpack.c.b16 %v999, %v998
        %v1010 = vpack.c.b16 %v1001, %v1000
        %v1011 = vpack.c.b16 %v1003, %v1002
        %1020 = vmatpush.bf16.msra.mxu0 %v1011
        %1021 = vmatpush.bf16.msra.mxu0 %v1010
        %1022 = vmatpush.bf16.msra.mxu0 %v1009
        %1023 = vmatpush.bf16.msra.mxu0 %v1008
        %1024 = vmatpush.bf16.msra.mxu0 %v1007
        %1025 = vmatpush.bf16.msra.mxu0 %v1006
        %1026 = vmatpush.bf16.msra.mxu0 %v1005
        %1027 = vmatpush.bf16.msra.mxu0 %v1004
        %1028 = vmatmul.bf16.gmra.mxu0 %v956
        %v1029 = vpop.f32.mrf.mxu0
        %v1030 = vadd.f32 %v922, %v1029
        %v1031 = vpop.f32.mrf.mxu0
        %v1032 = vadd.f32 %v922, %v1031
        %1033 = vmatmul.bf16.gmra.mxu0 %v957
        %v1034 = vpop.f32.mrf.mxu0
        %v1035 = vadd.f32 %v922, %v1034
        %v1036 = vpop.f32.mrf.mxu0
        %v1037 = vadd.f32 %v922, %v1036
        %1038 = vmatmul.bf16.gmra.mxu0 %v958
        %v1039 = vpop.f32.mrf.mxu0
        %v1040 = vadd.f32 %v922, %v1039
        %v1041 = vpop.f32.mrf.mxu0
        %v1042 = vadd.f32 %v922, %v1041
        %1043 = vmatmul.bf16.gmra.mxu0 %v959
        %v1044 = vpop.f32.mrf.mxu0
        %v1045 = vadd.f32 %v922, %v1044
        %v1046 = vpop.f32.mrf.mxu0
        %v1047 = vadd.f32 %v922, %v1046
        %1048 = vmatmul.bf16.gmra.mxu0 %v960
        %v1049 = vpop.f32.mrf.mxu0
        %v1050 = vadd.f32 %v922, %v1049
        %v1051 = vpop.f32.mrf.mxu0
        %v1052 = vadd.f32 %v922, %v1051
        %1053 = vmatmul.bf16.gmra.mxu0 %v961
        %v1054 = vpop.f32.mrf.mxu0
        %v1055 = vadd.f32 %v922, %v1054
        %v1056 = vpop.f32.mrf.mxu0
        %v1057 = vadd.f32 %v922, %v1056
        %1058 = vmatmul.bf16.gmra.mxu0 %v962
        %v1059 = vpop.f32.mrf.mxu0
        %v1060 = vadd.f32 %v922, %v1059
        %v1061 = vpop.f32.mrf.mxu0
        %v1062 = vadd.f32 %v922, %v1061
        %1063 = vmatmul.bf16.gmra.mxu0 %v963
        %v1064 = vpop.f32.mrf.mxu0
        %v1065 = vadd.f32 %v922, %v1064
        %v1066 = vpop.f32.mrf.mxu0
        %v1067 = vadd.f32 %v922, %v1066
        %1068 = vdwg.mxu0
        %v1069 = vmul.f32 %v1030, 0.5
        %v1070 = vmul.f32 %v1032, 0.5
        %v1071 = vmul.f32 %v1035, 0.5
        %v1072 = vmul.f32 %v1037, 0.5
        %v1073 = vmul.f32 %v1040, 0.5
        %v1074 = vmul.f32 %v1042, 0.5
        %v1075 = vmul.f32 %v1045, 0.5
        %v1076 = vmul.f32 %v1047, 0.5
        %v1077 = vmul.f32 %v1050, 0.5
        %v1078 = vmul.f32 %v1052, 0.5
        %v1079 = vmul.f32 %v1055, 0.5
        %v1080 = vmul.f32 %v1057, 0.5
        %v1081 = vmul.f32 %v1060, 0.5
        %v1082 = vmul.f32 %v1062, 0.5
        %v1083 = vmul.f32 %v1065, 0.5
        %v1084 = vmul.f32 %v1067, 0.5
        %v1085 = vmul.f32 %v1030, 0.70710677
        %v1086 = vmul.f32 %v1032, 0.70710677
        %v1087 = vmul.f32 %v1035, 0.70710677
        %v1088 = vmul.f32 %v1037, 0.70710677
        %v1089 = vmul.f32 %v1040, 0.70710677
        %v1090 = vmul.f32 %v1042, 0.70710677
        %v1091 = vmul.f32 %v1045, 0.70710677
        %v1092 = vmul.f32 %v1047, 0.70710677
        %v1093 = vmul.f32 %v1050, 0.70710677
        %v1094 = vmul.f32 %v1052, 0.70710677
        %v1095 = vmul.f32 %v1055, 0.70710677
        %v1096 = vmul.f32 %v1057, 0.70710677
        %v1097 = vmul.f32 %v1060, 0.70710677
        %v1098 = vmul.f32 %v1062, 0.70710677
        %v1099 = vmul.f32 %v1065, 0.70710677
        %v1100 = vmul.f32 %v1067, 0.70710677
        %v1101 = vmul.f32 %v1085, %v1085
        %v1102 = vmin.f32 16.0, %v1101
        %v1103 = vmul.f32 %v1102, 2.1237322e-06
        %v1104 = vadd.f32 %v1103, 0.00028619796
        %v1105 = vmul.f32 %v1102, %v1104
        %v1106 = vadd.f32 %v1105, 0.0036580483
        %v1107 = vmul.f32 %v1102, %v1106
        %v1108 = vadd.f32 %v1107, 0.05243302
        %v1109 = vmul.f32 %v1102, %v1108
        %v1110 = vadd.f32 %v1109, 0.18741608
        %v1111 = vmul.f32 %v1102, %v1110
        %v1112 = vadd.f32 %v1111, 1.1283791
        %v1113 = vmul.f32 %v1085, %v1112
        %v1114 = vmul.f32 %v1102, 3.8918573e-05
        %v1115 = vadd.f32 %v1114, 0.001143296
        %v1116 = vmul.f32 %v1102, %v1115
        %v1117 = vadd.f32 %v1116, 0.014752088
        %v1118 = vmul.f32 %v1102, %v1117
        %v1119 = vadd.f32 %v1118, 0.112945676
        %v1120 = vmul.f32 %v1102, %v1119
        %v1121 = vadd.f32 %v1120, 0.4994258
        %v1122 = vmul.f32 %v1102, %v1121
        %v1123 = vadd.f32 %v1122, 1.0
        %v1124 = vrcp.pop %v1123
        %v1125 = vmul.f32 %v1123, %v1124
        %v1126 = vsub.f32 1.0, %v1125
        %v1127 = vmul.f32 %v1124, %v1126
        %v1128 = vadd.f32 %v1124, %v1127
        %vm1129 = vweird.f32 %v1123
        %vm1130 = vweird.f32 %v1124
        %vm1131 = vmor %vm1129, %vm1130
        %v1132 = vsel %vm1131, %v1124, %v1128
        %v1133 = vand.u32 2147483647, %v1123
        %vm1134 = vcmp.eq.f32.partialorder %v1133, 8.507059e+37
        %v1135 = vand.u32 %v1123, 2147483648
        %v1136 = vor.u32 1.1754944e-38, %v1135
        %v1137 = vsel %vm1134, %v1136, %v1132
        %v1138 = vmul.f32 %v1113, %v1137
        %v1139 = vmin.f32 %v1138, 1.0
        %v1140 = vmax.f32 %v1139, -1.0
        %v1141 = vmul.f32 %v1086, %v1086
        %v1142 = vmin.f32 16.0, %v1141
        %v1143 = vmul.f32 %v1142, 2.1237322e-06
        %v1144 = vadd.f32 %v1143, 0.00028619796
        %v1145 = vmul.f32 %v1142, %v1144
        %v1146 = vadd.f32 %v1145, 0.0036580483
        %v1147 = vmul.f32 %v1142, %v1146
        %v1148 = vadd.f32 %v1147, 0.05243302
        %v1149 = vmul.f32 %v1142, %v1148
        %v1150 = vadd.f32 %v1149, 0.18741608
        %v1151 = vmul.f32 %v1142, %v1150
        %v1152 = vadd.f32 %v1151, 1.1283791
        %v1153 = vmul.f32 %v1086, %v1152
        %v1154 = vmul.f32 %v1142, 3.8918573e-05
        %v1155 = vadd.f32 %v1154, 0.001143296
        %v1156 = vmul.f32 %v1142, %v1155
        %v1157 = vadd.f32 %v1156, 0.014752088
        %v1158 = vmul.f32 %v1142, %v1157
        %v1159 = vadd.f32 %v1158, 0.112945676
        %v1160 = vmul.f32 %v1142, %v1159
        %v1161 = vadd.f32 %v1160, 0.4994258
        %v1162 = vmul.f32 %v1142, %v1161
        %v1163 = vadd.f32 %v1162, 1.0
        %v1164 = vrcp.pop %v1163
        %v1165 = vmul.f32 %v1163, %v1164
        %v1166 = vsub.f32 1.0, %v1165
        %v1167 = vmul.f32 %v1164, %v1166
        %v1168 = vadd.f32 %v1164, %v1167
        %vm1169 = vweird.f32 %v1163
        %vm1170 = vweird.f32 %v1164
        %vm1171 = vmor %vm1169, %vm1170
        %v1172 = vsel %vm1171, %v1164, %v1168
        %v1173 = vand.u32 2147483647, %v1163
        %vm1174 = vcmp.eq.f32.partialorder %v1173, 8.507059e+37
        %v1175 = vand.u32 %v1163, 2147483648
        %v1176 = vor.u32 1.1754944e-38, %v1175
        %v1177 = vsel %vm1174, %v1176, %v1172
        %v1178 = vmul.f32 %v1153, %v1177
        %v1179 = vmin.f32 %v1178, 1.0
        %v1180 = vmax.f32 %v1179, -1.0
        %v1181 = vmul.f32 %v1087, %v1087
        %v1182 = vmin.f32 16.0, %v1181
        %v1183 = vmul.f32 %v1182, 2.1237322e-06
        %v1184 = vadd.f32 %v1183, 0.00028619796
        %v1185 = vmul.f32 %v1182, %v1184
        %v1186 = vadd.f32 %v1185, 0.0036580483
        %v1187 = vmul.f32 %v1182, %v1186
        %v1188 = vadd.f32 %v1187, 0.05243302
        %v1189 = vmul.f32 %v1182, %v1188
        %v1190 = vadd.f32 %v1189, 0.18741608
        %v1191 = vmul.f32 %v1182, %v1190
        %v1192 = vadd.f32 %v1191, 1.1283791
        %v1193 = vmul.f32 %v1087, %v1192
        %v1194 = vmul.f32 %v1182, 3.8918573e-05
        %v1195 = vadd.f32 %v1194, 0.001143296
        %v1196 = vmul.f32 %v1182, %v1195
        %v1197 = vadd.f32 %v1196, 0.014752088
        %v1198 = vmul.f32 %v1182, %v1197
        %v1199 = vadd.f32 %v1198, 0.112945676
        %v1200 = vmul.f32 %v1182, %v1199
        %v1201 = vadd.f32 %v1200, 0.4994258
        %v1202 = vmul.f32 %v1182, %v1201
        %v1203 = vadd.f32 %v1202, 1.0
        %v1204 = vrcp.pop %v1203
        %v1205 = vmul.f32 %v1203, %v1204
        %v1206 = vsub.f32 1.0, %v1205
        %v1207 = vmul.f32 %v1204, %v1206
        %v1208 = vadd.f32 %v1204, %v1207
        %vm1209 = vweird.f32 %v1203
        %vm1210 = vweird.f32 %v1204
        %vm1211 = vmor %vm1209, %vm1210
        %v1212 = vsel %vm1211, %v1204, %v1208
        %v1213 = vand.u32 2147483647, %v1203
        %vm1214 = vcmp.eq.f32.partialorder %v1213, 8.507059e+37
        %v1215 = vand.u32 %v1203, 2147483648
        %v1216 = vor.u32 1.1754944e-38, %v1215
        %v1217 = vsel %vm1214, %v1216, %v1212
        %v1218 = vmul.f32 %v1193, %v1217
        %v1219 = vmin.f32 %v1218, 1.0
        %v1220 = vmax.f32 %v1219, -1.0
        %v1221 = vmul.f32 %v1088, %v1088
        %v1222 = vmin.f32 16.0, %v1221
        %v1223 = vmul.f32 %v1222, 2.1237322e-06
        %v1224 = vadd.f32 %v1223, 0.00028619796
        %v1225 = vmul.f32 %v1222, %v1224
        %v1226 = vadd.f32 %v1225, 0.0036580483
        %v1227 = vmul.f32 %v1222, %v1226
        %v1228 = vadd.f32 %v1227, 0.05243302
        %v1229 = vmul.f32 %v1222, %v1228
        %v1230 = vadd.f32 %v1229, 0.18741608
        %v1231 = vmul.f32 %v1222, %v1230
        %v1232 = vadd.f32 %v1231, 1.1283791
        %v1233 = vmul.f32 %v1088, %v1232
        %v1234 = vmul.f32 %v1222, 3.8918573e-05
        %v1235 = vadd.f32 %v1234, 0.001143296
        %v1236 = vmul.f32 %v1222, %v1235
        %v1237 = vadd.f32 %v1236, 0.014752088
        %v1238 = vmul.f32 %v1222, %v1237
        %v1239 = vadd.f32 %v1238, 0.112945676
        %v1240 = vmul.f32 %v1222, %v1239
        %v1241 = vadd.f32 %v1240, 0.4994258
        %v1242 = vmul.f32 %v1222, %v1241
        %v1243 = vadd.f32 %v1242, 1.0
        %v1244 = vrcp.pop %v1243
        %v1245 = vmul.f32 %v1243, %v1244
        %v1246 = vsub.f32 1.0, %v1245
        %v1247 = vmul.f32 %v1244, %v1246
        %v1248 = vadd.f32 %v1244, %v1247
        %vm1249 = vweird.f32 %v1243
        %vm1250 = vweird.f32 %v1244
        %vm1251 = vmor %vm1249, %vm1250
        %v1252 = vsel %vm1251, %v1244, %v1248
        %v1253 = vand.u32 2147483647, %v1243
        %vm1254 = vcmp.eq.f32.partialorder %v1253, 8.507059e+37
        %v1255 = vand.u32 %v1243, 2147483648
        %v1256 = vor.u32 1.1754944e-38, %v1255
        %v1257 = vsel %vm1254, %v1256, %v1252
        %v1258 = vmul.f32 %v1233, %v1257
        %v1259 = vmin.f32 %v1258, 1.0
        %v1260 = vmax.f32 %v1259, -1.0
        %v1261 = vmul.f32 %v1089, %v1089
        %v1262 = vmin.f32 16.0, %v1261
        %v1263 = vmul.f32 %v1262, 2.1237322e-06
        %v1264 = vadd.f32 %v1263, 0.00028619796
        %v1265 = vmul.f32 %v1262, %v1264
        %v1266 = vadd.f32 %v1265, 0.0036580483
        %v1267 = vmul.f32 %v1262, %v1266
        %v1268 = vadd.f32 %v1267, 0.05243302
        %v1269 = vmul.f32 %v1262, %v1268
        %v1270 = vadd.f32 %v1269, 0.18741608
        %v1271 = vmul.f32 %v1262, %v1270
        %v1272 = vadd.f32 %v1271, 1.1283791
        %v1273 = vmul.f32 %v1089, %v1272
        %v1274 = vmul.f32 %v1262, 3.8918573e-05
        %v1275 = vadd.f32 %v1274, 0.001143296
        %v1276 = vmul.f32 %v1262, %v1275
        %v1277 = vadd.f32 %v1276, 0.014752088
        %v1278 = vmul.f32 %v1262, %v1277
        %v1279 = vadd.f32 %v1278, 0.112945676
        %v1280 = vmul.f32 %v1262, %v1279
        %v1281 = vadd.f32 %v1280, 0.4994258
        %v1282 = vmul.f32 %v1262, %v1281
        %v1283 = vadd.f32 %v1282, 1.0
        %v1284 = vrcp.pop %v1283
        %v1285 = vmul.f32 %v1283, %v1284
        %v1286 = vsub.f32 1.0, %v1285
        %v1287 = vmul.f32 %v1284, %v1286
        %v1288 = vadd.f32 %v1284, %v1287
        %vm1289 = vweird.f32 %v1283
        %vm1290 = vweird.f32 %v1284
        %vm1291 = vmor %vm1289, %vm1290
        %v1292 = vsel %vm1291, %v1284, %v1288
        %v1293 = vand.u32 2147483647, %v1283
        %vm1294 = vcmp.eq.f32.partialorder %v1293, 8.507059e+37
        %v1295 = vand.u32 %v1283, 2147483648
        %v1296 = vor.u32 1.1754944e-38, %v1295
        %v1297 = vsel %vm1294, %v1296, %v1292
        %v1298 = vmul.f32 %v1273, %v1297
        %v1299 = vmin.f32 %v1298, 1.0
        %v1300 = vmax.f32 %v1299, -1.0
        %v1301 = vmul.f32 %v1090, %v1090
        %v1302 = vmin.f32 16.0, %v1301
        %v1303 = vmul.f32 %v1302, 2.1237322e-06
        %v1304 = vadd.f32 %v1303, 0.00028619796
        %v1305 = vmul.f32 %v1302, %v1304
        %v1306 = vadd.f32 %v1305, 0.0036580483
        %v1307 = vmul.f32 %v1302, %v1306
        %v1308 = vadd.f32 %v1307, 0.05243302
        %v1309 = vmul.f32 %v1302, %v1308
        %v1310 = vadd.f32 %v1309, 0.18741608
        %v1311 = vmul.f32 %v1302, %v1310
        %v1312 = vadd.f32 %v1311, 1.1283791
        %v1313 = vmul.f32 %v1090, %v1312
        %v1314 = vmul.f32 %v1302, 3.8918573e-05
        %v1315 = vadd.f32 %v1314, 0.001143296
        %v1316 = vmul.f32 %v1302, %v1315
        %v1317 = vadd.f32 %v1316, 0.014752088
        %v1318 = vmul.f32 %v1302, %v1317
        %v1319 = vadd.f32 %v1318, 0.112945676
        %v1320 = vmul.f32 %v1302, %v1319
        %v1321 = vadd.f32 %v1320, 0.4994258
        %v1322 = vmul.f32 %v1302, %v1321
        %v1323 = vadd.f32 %v1322, 1.0
        %v1324 = vrcp.pop %v1323
        %v1325 = vmul.f32 %v1323, %v1324
        %v1326 = vsub.f32 1.0, %v1325
        %v1327 = vmul.f32 %v1324, %v1326
        %v1328 = vadd.f32 %v1324, %v1327
        %vm1329 = vweird.f32 %v1323
        %vm1330 = vweird.f32 %v1324
        %vm1331 = vmor %vm1329, %vm1330
        %v1332 = vsel %vm1331, %v1324, %v1328
        %v1333 = vand.u32 2147483647, %v1323
        %vm1334 = vcmp.eq.f32.partialorder %v1333, 8.507059e+37
        %v1335 = vand.u32 %v1323, 2147483648
        %v1336 = vor.u32 1.1754944e-38, %v1335
        %v1337 = vsel %vm1334, %v1336, %v1332
        %v1338 = vmul.f32 %v1313, %v1337
        %v1339 = vmin.f32 %v1338, 1.0
        %v1340 = vmax.f32 %v1339, -1.0
        %v1341 = vmul.f32 %v1091, %v1091
        %v1342 = vmin.f32 16.0, %v1341
        %v1343 = vmul.f32 %v1342, 2.1237322e-06
        %v1344 = vadd.f32 %v1343, 0.00028619796
        %v1345 = vmul.f32 %v1342, %v1344
        %v1346 = vadd.f32 %v1345, 0.0036580483
        %v1347 = vmul.f32 %v1342, %v1346
        %v1348 = vadd.f32 %v1347, 0.05243302
        %v1349 = vmul.f32 %v1342, %v1348
        %v1350 = vadd.f32 %v1349, 0.18741608
        %v1351 = vmul.f32 %v1342, %v1350
        %v1352 = vadd.f32 %v1351, 1.1283791
        %v1353 = vmul.f32 %v1091, %v1352
        %v1354 = vmul.f32 %v1342, 3.8918573e-05
        %v1355 = vadd.f32 %v1354, 0.001143296
        %v1356 = vmul.f32 %v1342, %v1355
        %v1357 = vadd.f32 %v1356, 0.014752088
        %v1358 = vmul.f32 %v1342, %v1357
        %v1359 = vadd.f32 %v1358, 0.112945676
        %v1360 = vmul.f32 %v1342, %v1359
        %v1361 = vadd.f32 %v1360, 0.4994258
        %v1362 = vmul.f32 %v1342, %v1361
        %v1363 = vadd.f32 %v1362, 1.0
        %v1364 = vrcp.pop %v1363
        %v1365 = vmul.f32 %v1363, %v1364
        %v1366 = vsub.f32 1.0, %v1365
        %v1367 = vmul.f32 %v1364, %v1366
        %v1368 = vadd.f32 %v1364, %v1367
        %vm1369 = vweird.f32 %v1363
        %vm1370 = vweird.f32 %v1364
        %vm1371 = vmor %vm1369, %vm1370
        %v1372 = vsel %vm1371, %v1364, %v1368
        %v1373 = vand.u32 2147483647, %v1363
        %vm1374 = vcmp.eq.f32.partialorder %v1373, 8.507059e+37
        %v1375 = vand.u32 %v1363, 2147483648
        %v1376 = vor.u32 1.1754944e-38, %v1375
        %v1377 = vsel %vm1374, %v1376, %v1372
        %v1378 = vmul.f32 %v1353, %v1377
        %v1379 = vmin.f32 %v1378, 1.0
        %v1380 = vmax.f32 %v1379, -1.0
        %v1381 = vmul.f32 %v1092, %v1092
        %v1382 = vmin.f32 16.0, %v1381
        %v1383 = vmul.f32 %v1382, 2.1237322e-06
        %v1384 = vadd.f32 %v1383, 0.00028619796
        %v1385 = vmul.f32 %v1382, %v1384
        %v1386 = vadd.f32 %v1385, 0.0036580483
        %v1387 = vmul.f32 %v1382, %v1386
        %v1388 = vadd.f32 %v1387, 0.05243302
        %v1389 = vmul.f32 %v1382, %v1388
        %v1390 = vadd.f32 %v1389, 0.18741608
        %v1391 = vmul.f32 %v1382, %v1390
        %v1392 = vadd.f32 %v1391, 1.1283791
        %v1393 = vmul.f32 %v1092, %v1392
        %v1394 = vmul.f32 %v1382, 3.8918573e-05
        %v1395 = vadd.f32 %v1394, 0.001143296
        %v1396 = vmul.f32 %v1382, %v1395
        %v1397 = vadd.f32 %v1396, 0.014752088
        %v1398 = vmul.f32 %v1382, %v1397
        %v1399 = vadd.f32 %v1398, 0.112945676
        %v1400 = vmul.f32 %v1382, %v1399
        %v1401 = vadd.f32 %v1400, 0.4994258
        %v1402 = vmul.f32 %v1382, %v1401
        %v1403 = vadd.f32 %v1402, 1.0
        %v1404 = vrcp.pop %v1403
        %v1405 = vmul.f32 %v1403, %v1404
        %v1406 = vsub.f32 1.0, %v1405
        %v1407 = vmul.f32 %v1404, %v1406
        %v1408 = vadd.f32 %v1404, %v1407
        %vm1409 = vweird.f32 %v1403
        %vm1410 = vweird.f32 %v1404
        %vm1411 = vmor %vm1409, %vm1410
        %v1412 = vsel %vm1411, %v1404, %v1408
        %v1413 = vand.u32 2147483647, %v1403
        %vm1414 = vcmp.eq.f32.partialorder %v1413, 8.507059e+37
        %v1415 = vand.u32 %v1403, 2147483648
        %v1416 = vor.u32 1.1754944e-38, %v1415
        %v1417 = vsel %vm1414, %v1416, %v1412
        %v1418 = vmul.f32 %v1393, %v1417
        %v1419 = vmin.f32 %v1418, 1.0
        %v1420 = vmax.f32 %v1419, -1.0
        %v1421 = vmul.f32 %v1093, %v1093
        %v1422 = vmin.f32 16.0, %v1421
        %v1423 = vmul.f32 %v1422, 2.1237322e-06
        %v1424 = vadd.f32 %v1423, 0.00028619796
        %v1425 = vmul.f32 %v1422, %v1424
        %v1426 = vadd.f32 %v1425, 0.0036580483
        %v1427 = vmul.f32 %v1422, %v1426
        %v1428 = vadd.f32 %v1427, 0.05243302
        %v1429 = vmul.f32 %v1422, %v1428
        %v1430 = vadd.f32 %v1429, 0.18741608
        %v1431 = vmul.f32 %v1422, %v1430
        %v1432 = vadd.f32 %v1431, 1.1283791
        %v1433 = vmul.f32 %v1093, %v1432
        %v1434 = vmul.f32 %v1422, 3.8918573e-05
        %v1435 = vadd.f32 %v1434, 0.001143296
        %v1436 = vmul.f32 %v1422, %v1435
        %v1437 = vadd.f32 %v1436, 0.014752088
        %v1438 = vmul.f32 %v1422, %v1437
        %v1439 = vadd.f32 %v1438, 0.112945676
        %v1440 = vmul.f32 %v1422, %v1439
        %v1441 = vadd.f32 %v1440, 0.4994258
        %v1442 = vmul.f32 %v1422, %v1441
        %v1443 = vadd.f32 %v1442, 1.0
        %v1444 = vrcp.pop %v1443
        %v1445 = vmul.f32 %v1443, %v1444
        %v1446 = vsub.f32 1.0, %v1445
        %v1447 = vmul.f32 %v1444, %v1446
        %v1448 = vadd.f32 %v1444, %v1447
        %vm1449 = vweird.f32 %v1443
        %vm1450 = vweird.f32 %v1444
        %vm1451 = vmor %vm1449, %vm1450
        %v1452 = vsel %vm1451, %v1444, %v1448
        %v1453 = vand.u32 2147483647, %v1443
        %vm1454 = vcmp.eq.f32.partialorder %v1453, 8.507059e+37
        %v1455 = vand.u32 %v1443, 2147483648
        %v1456 = vor.u32 1.1754944e-38, %v1455
        %v1457 = vsel %vm1454, %v1456, %v1452
        %v1458 = vmul.f32 %v1433, %v1457
        %v1459 = vmin.f32 %v1458, 1.0
        %v1460 = vmax.f32 %v1459, -1.0
        %v1461 = vmul.f32 %v1094, %v1094
        %v1462 = vmin.f32 16.0, %v1461
        %v1463 = vmul.f32 %v1462, 2.1237322e-06
        %v1464 = vadd.f32 %v1463, 0.00028619796
        %v1465 = vmul.f32 %v1462, %v1464
        %v1466 = vadd.f32 %v1465, 0.0036580483
        %v1467 = vmul.f32 %v1462, %v1466
        %v1468 = vadd.f32 %v1467, 0.05243302
        %v1469 = vmul.f32 %v1462, %v1468
        %v1470 = vadd.f32 %v1469, 0.18741608
        %v1471 = vmul.f32 %v1462, %v1470
        %v1472 = vadd.f32 %v1471, 1.1283791
        %v1473 = vmul.f32 %v1094, %v1472
        %v1474 = vmul.f32 %v1462, 3.8918573e-05
        %v1475 = vadd.f32 %v1474, 0.001143296
        %v1476 = vmul.f32 %v1462, %v1475
        %v1477 = vadd.f32 %v1476, 0.014752088
        %v1478 = vmul.f32 %v1462, %v1477
        %v1479 = vadd.f32 %v1478, 0.112945676
        %v1480 = vmul.f32 %v1462, %v1479
        %v1481 = vadd.f32 %v1480, 0.4994258
        %v1482 = vmul.f32 %v1462, %v1481
        %v1483 = vadd.f32 %v1482, 1.0
        %v1484 = vrcp.pop %v1483
        %v1485 = vmul.f32 %v1483, %v1484
        %v1486 = vsub.f32 1.0, %v1485
        %v1487 = vmul.f32 %v1484, %v1486
        %v1488 = vadd.f32 %v1484, %v1487
        %vm1489 = vweird.f32 %v1483
        %vm1490 = vweird.f32 %v1484
        %vm1491 = vmor %vm1489, %vm1490
        %v1492 = vsel %vm1491, %v1484, %v1488
        %v1493 = vand.u32 2147483647, %v1483
        %vm1494 = vcmp.eq.f32.partialorder %v1493, 8.507059e+37
        %v1495 = vand.u32 %v1483, 2147483648
        %v1496 = vor.u32 1.1754944e-38, %v1495
        %v1497 = vsel %vm1494, %v1496, %v1492
        %v1498 = vmul.f32 %v1473, %v1497
        %v1499 = vmin.f32 %v1498, 1.0
        %v1500 = vmax.f32 %v1499, -1.0
        %v1501 = vmul.f32 %v1095, %v1095
        %v1502 = vmin.f32 16.0, %v1501
        %v1503 = vmul.f32 %v1502, 2.1237322e-06
        %v1504 = vadd.f32 %v1503, 0.00028619796
        %v1505 = vmul.f32 %v1502, %v1504
        %v1506 = vadd.f32 %v1505, 0.0036580483
        %v1507 = vmul.f32 %v1502, %v1506
        %v1508 = vadd.f32 %v1507, 0.05243302
        %v1509 = vmul.f32 %v1502, %v1508
        %v1510 = vadd.f32 %v1509, 0.18741608
        %v1511 = vmul.f32 %v1502, %v1510
        %v1512 = vadd.f32 %v1511, 1.1283791
        %v1513 = vmul.f32 %v1095, %v1512
        %v1514 = vmul.f32 %v1502, 3.8918573e-05
        %v1515 = vadd.f32 %v1514, 0.001143296
        %v1516 = vmul.f32 %v1502, %v1515
        %v1517 = vadd.f32 %v1516, 0.014752088
        %v1518 = vmul.f32 %v1502, %v1517
        %v1519 = vadd.f32 %v1518, 0.112945676
        %v1520 = vmul.f32 %v1502, %v1519
        %v1521 = vadd.f32 %v1520, 0.4994258
        %v1522 = vmul.f32 %v1502, %v1521
        %v1523 = vadd.f32 %v1522, 1.0
        %v1524 = vrcp.pop %v1523
        %v1525 = vmul.f32 %v1523, %v1524
        %v1526 = vsub.f32 1.0, %v1525
        %v1527 = vmul.f32 %v1524, %v1526
        %v1528 = vadd.f32 %v1524, %v1527
        %vm1529 = vweird.f32 %v1523
        %vm1530 = vweird.f32 %v1524
        %vm1531 = vmor %vm1529, %vm1530
        %v1532 = vsel %vm1531, %v1524, %v1528
        %v1533 = vand.u32 2147483647, %v1523
        %vm1534 = vcmp.eq.f32.partialorder %v1533, 8.507059e+37
        %v1535 = vand.u32 %v1523, 2147483648
        %v1536 = vor.u32 1.1754944e-38, %v1535
        %v1537 = vsel %vm1534, %v1536, %v1532
        %v1538 = vmul.f32 %v1513, %v1537
        %v1539 = vmin.f32 %v1538, 1.0
        %v1540 = vmax.f32 %v1539, -1.0
        %v1541 = vmul.f32 %v1096, %v1096
        %v1542 = vmin.f32 16.0, %v1541
        %v1543 = vmul.f32 %v1542, 2.1237322e-06
        %v1544 = vadd.f32 %v1543, 0.00028619796
        %v1545 = vmul.f32 %v1542, %v1544
        %v1546 = vadd.f32 %v1545, 0.0036580483
        %v1547 = vmul.f32 %v1542, %v1546
        %v1548 = vadd.f32 %v1547, 0.05243302
        %v1549 = vmul.f32 %v1542, %v1548
        %v1550 = vadd.f32 %v1549, 0.18741608
        %v1551 = vmul.f32 %v1542, %v1550
        %v1552 = vadd.f32 %v1551, 1.1283791
        %v1553 = vmul.f32 %v1096, %v1552
        %v1554 = vmul.f32 %v1542, 3.8918573e-05
        %v1555 = vadd.f32 %v1554, 0.001143296
        %v1556 = vmul.f32 %v1542, %v1555
        %v1557 = vadd.f32 %v1556, 0.014752088
        %v1558 = vmul.f32 %v1542, %v1557
        %v1559 = vadd.f32 %v1558, 0.112945676
        %v1560 = vmul.f32 %v1542, %v1559
        %v1561 = vadd.f32 %v1560, 0.4994258
        %v1562 = vmul.f32 %v1542, %v1561
        %v1563 = vadd.f32 %v1562, 1.0
        %v1564 = vrcp.pop %v1563
        %v1565 = vmul.f32 %v1563, %v1564
        %v1566 = vsub.f32 1.0, %v1565
        %v1567 = vmul.f32 %v1564, %v1566
        %v1568 = vadd.f32 %v1564, %v1567
        %vm1569 = vweird.f32 %v1563
        %vm1570 = vweird.f32 %v1564
        %vm1571 = vmor %vm1569, %vm1570
        %v1572 = vsel %vm1571, %v1564, %v1568
        %v1573 = vand.u32 2147483647, %v1563
        %vm1574 = vcmp.eq.f32.partialorder %v1573, 8.507059e+37
        %v1575 = vand.u32 %v1563, 2147483648
        %v1576 = vor.u32 1.1754944e-38, %v1575
        %v1577 = vsel %vm1574, %v1576, %v1572
        %v1578 = vmul.f32 %v1553, %v1577
        %v1579 = vmin.f32 %v1578, 1.0
        %v1580 = vmax.f32 %v1579, -1.0
        %v1581 = vmul.f32 %v1097, %v1097
        %v1582 = vmin.f32 16.0, %v1581
        %v1583 = vmul.f32 %v1582, 2.1237322e-06
        %v1584 = vadd.f32 %v1583, 0.00028619796
        %v1585 = vmul.f32 %v1582, %v1584
        %v1586 = vadd.f32 %v1585, 0.0036580483
        %v1587 = vmul.f32 %v1582, %v1586
        %v1588 = vadd.f32 %v1587, 0.05243302
        %v1589 = vmul.f32 %v1582, %v1588
        %v1590 = vadd.f32 %v1589, 0.18741608
        %v1591 = vmul.f32 %v1582, %v1590
        %v1592 = vadd.f32 %v1591, 1.1283791
        %v1593 = vmul.f32 %v1097, %v1592
        %v1594 = vmul.f32 %v1582, 3.8918573e-05
        %v1595 = vadd.f32 %v1594, 0.001143296
        %v1596 = vmul.f32 %v1582, %v1595
        %v1597 = vadd.f32 %v1596, 0.014752088
        %v1598 = vmul.f32 %v1582, %v1597
        %v1599 = vadd.f32 %v1598, 0.112945676
        %v1600 = vmul.f32 %v1582, %v1599
        %v1601 = vadd.f32 %v1600, 0.4994258
        %v1602 = vmul.f32 %v1582, %v1601
        %v1603 = vadd.f32 %v1602, 1.0
        %v1604 = vrcp.pop %v1603
        %v1605 = vmul.f32 %v1603, %v1604
        %v1606 = vsub.f32 1.0, %v1605
        %v1607 = vmul.f32 %v1604, %v1606
        %v1608 = vadd.f32 %v1604, %v1607
        %vm1609 = vweird.f32 %v1603
        %vm1610 = vweird.f32 %v1604
        %vm1611 = vmor %vm1609, %vm1610
        %v1612 = vsel %vm1611, %v1604, %v1608
        %v1613 = vand.u32 2147483647, %v1603
        %vm1614 = vcmp.eq.f32.partialorder %v1613, 8.507059e+37
        %v1615 = vand.u32 %v1603, 2147483648
        %v1616 = vor.u32 1.1754944e-38, %v1615
        %v1617 = vsel %vm1614, %v1616, %v1612
        %v1618 = vmul.f32 %v1593, %v1617
        %v1619 = vmin.f32 %v1618, 1.0
        %v1620 = vmax.f32 %v1619, -1.0
        %v1621 = vmul.f32 %v1098, %v1098
        %v1622 = vmin.f32 16.0, %v1621
        %v1623 = vmul.f32 %v1622, 2.1237322e-06
        %v1624 = vadd.f32 %v1623, 0.00028619796
        %v1625 = vmul.f32 %v1622, %v1624
        %v1626 = vadd.f32 %v1625, 0.0036580483
        %v1627 = vmul.f32 %v1622, %v1626
        %v1628 = vadd.f32 %v1627, 0.05243302
        %v1629 = vmul.f32 %v1622, %v1628
        %v1630 = vadd.f32 %v1629, 0.18741608
        %v1631 = vmul.f32 %v1622, %v1630
        %v1632 = vadd.f32 %v1631, 1.1283791
        %v1633 = vmul.f32 %v1098, %v1632
        %v1634 = vmul.f32 %v1622, 3.8918573e-05
        %v1635 = vadd.f32 %v1634, 0.001143296
        %v1636 = vmul.f32 %v1622, %v1635
        %v1637 = vadd.f32 %v1636, 0.014752088
        %v1638 = vmul.f32 %v1622, %v1637
        %v1639 = vadd.f32 %v1638, 0.112945676
        %v1640 = vmul.f32 %v1622, %v1639
        %v1641 = vadd.f32 %v1640, 0.4994258
        %v1642 = vmul.f32 %v1622, %v1641
        %v1643 = vadd.f32 %v1642, 1.0
        %v1644 = vrcp.pop %v1643
        %v1645 = vmul.f32 %v1643, %v1644
        %v1646 = vsub.f32 1.0, %v1645
        %v1647 = vmul.f32 %v1644, %v1646
        %v1648 = vadd.f32 %v1644, %v1647
        %vm1649 = vweird.f32 %v1643
        %vm1650 = vweird.f32 %v1644
        %vm1651 = vmor %vm1649, %vm1650
        %v1652 = vsel %vm1651, %v1644, %v1648
        %v1653 = vand.u32 2147483647, %v1643
        %vm1654 = vcmp.eq.f32.partialorder %v1653, 8.507059e+37
        %v1655 = vand.u32 %v1643, 2147483648
        %v1656 = vor.u32 1.1754944e-38, %v1655
        %v1657 = vsel %vm1654, %v1656, %v1652
        %v1658 = vmul.f32 %v1633, %v1657
        %v1659 = vmin.f32 %v1658, 1.0
        %v1660 = vmax.f32 %v1659, -1.0
        %v1661 = vmul.f32 %v1099, %v1099
        %v1662 = vmin.f32 16.0, %v1661
        %v1663 = vmul.f32 %v1662, 2.1237322e-06
        %v1664 = vadd.f32 %v1663, 0.00028619796
        %v1665 = vmul.f32 %v1662, %v1664
        %v1666 = vadd.f32 %v1665, 0.0036580483
        %v1667 = vmul.f32 %v1662, %v1666
        %v1668 = vadd.f32 %v1667, 0.05243302
        %v1669 = vmul.f32 %v1662, %v1668
        %v1670 = vadd.f32 %v1669, 0.18741608
        %v1671 = vmul.f32 %v1662, %v1670
        %v1672 = vadd.f32 %v1671, 1.1283791
        %v1673 = vmul.f32 %v1099, %v1672
        %v1674 = vmul.f32 %v1662, 3.8918573e-05
        %v1675 = vadd.f32 %v1674, 0.001143296
        %v1676 = vmul.f32 %v1662, %v1675
        %v1677 = vadd.f32 %v1676, 0.014752088
        %v1678 = vmul.f32 %v1662, %v1677
        %v1679 = vadd.f32 %v1678, 0.112945676
        %v1680 = vmul.f32 %v1662, %v1679
        %v1681 = vadd.f32 %v1680, 0.4994258
        %v1682 = vmul.f32 %v1662, %v1681
        %v1683 = vadd.f32 %v1682, 1.0
        %v1684 = vrcp.pop %v1683
        %v1685 = vmul.f32 %v1683, %v1684
        %v1686 = vsub.f32 1.0, %v1685
        %v1687 = vmul.f32 %v1684, %v1686
        %v1688 = vadd.f32 %v1684, %v1687
        %vm1689 = vweird.f32 %v1683
        %vm1690 = vweird.f32 %v1684
        %vm1691 = vmor %vm1689, %vm1690
        %v1692 = vsel %vm1691, %v1684, %v1688
        %v1693 = vand.u32 2147483647, %v1683
        %vm1694 = vcmp.eq.f32.partialorder %v1693, 8.507059e+37
        %v1695 = vand.u32 %v1683, 2147483648
        %v1696 = vor.u32 1.1754944e-38, %v1695
        %v1697 = vsel %vm1694, %v1696, %v1692
        %v1698 = vmul.f32 %v1673, %v1697
        %v1699 = vmin.f32 %v1698, 1.0
        %v1700 = vmax.f32 %v1699, -1.0
        %v1701 = vmul.f32 %v1100, %v1100
        %v1702 = vmin.f32 16.0, %v1701
        %v1703 = vmul.f32 %v1702, 2.1237322e-06
        %v1704 = vadd.f32 %v1703, 0.00028619796
        %v1705 = vmul.f32 %v1702, %v1704
        %v1706 = vadd.f32 %v1705, 0.0036580483
        %v1707 = vmul.f32 %v1702, %v1706
        %v1708 = vadd.f32 %v1707, 0.05243302
        %v1709 = vmul.f32 %v1702, %v1708
        %v1710 = vadd.f32 %v1709, 0.18741608
        %v1711 = vmul.f32 %v1702, %v1710
        %v1712 = vadd.f32 %v1711, 1.1283791
        %v1713 = vmul.f32 %v1100, %v1712
        %v1714 = vmul.f32 %v1702, 3.8918573e-05
        %v1715 = vadd.f32 %v1714, 0.001143296
        %v1716 = vmul.f32 %v1702, %v1715
        %v1717 = vadd.f32 %v1716, 0.014752088
        %v1718 = vmul.f32 %v1702, %v1717
        %v1719 = vadd.f32 %v1718, 0.112945676
        %v1720 = vmul.f32 %v1702, %v1719
        %v1721 = vadd.f32 %v1720, 0.4994258
        %v1722 = vmul.f32 %v1702, %v1721
        %v1723 = vadd.f32 %v1722, 1.0
        %v1724 = vrcp.pop %v1723
        %v1725 = vmul.f32 %v1723, %v1724
        %v1726 = vsub.f32 1.0, %v1725
        %v1727 = vmul.f32 %v1724, %v1726
        %v1728 = vadd.f32 %v1724, %v1727
        %vm1729 = vweird.f32 %v1723
        %vm1730 = vweird.f32 %v1724
        %vm1731 = vmor %vm1729, %vm1730
        %v1732 = vsel %vm1731, %v1724, %v1728
        %v1733 = vand.u32 2147483647, %v1723
        %vm1734 = vcmp.eq.f32.partialorder %v1733, 8.507059e+37
        %v1735 = vand.u32 %v1723, 2147483648
        %v1736 = vor.u32 1.1754944e-38, %v1735
        %v1737 = vsel %vm1734, %v1736, %v1732
        %v1738 = vmul.f32 %v1713, %v1737
        %v1739 = vmin.f32 %v1738, 1.0
        %v1740 = vmax.f32 %v1739, -1.0
        %v1741 = vadd.f32 %v1140, 1.0
        %v1742 = vadd.f32 %v1180, 1.0
        %v1743 = vadd.f32 %v1220, 1.0
        %v1744 = vadd.f32 %v1260, 1.0
        %v1745 = vadd.f32 %v1300, 1.0
        %v1746 = vadd.f32 %v1340, 1.0
        %v1747 = vadd.f32 %v1380, 1.0
        %v1748 = vadd.f32 %v1420, 1.0
        %v1749 = vadd.f32 %v1460, 1.0
        %v1750 = vadd.f32 %v1500, 1.0
        %v1751 = vadd.f32 %v1540, 1.0
        %v1752 = vadd.f32 %v1580, 1.0
        %v1753 = vadd.f32 %v1620, 1.0
        %v1754 = vadd.f32 %v1660, 1.0
        %v1755 = vadd.f32 %v1700, 1.0
        %v1756 = vadd.f32 %v1740, 1.0
        %v1757 = vmul.f32 %v1069, %v1741
        %v1758 = vmul.f32 %v1070, %v1742
        %v1759 = vmul.f32 %v1071, %v1743
        %v1760 = vmul.f32 %v1072, %v1744
        %v1761 = vmul.f32 %v1073, %v1745
        %v1762 = vmul.f32 %v1074, %v1746
        %v1763 = vmul.f32 %v1075, %v1747
        %v1764 = vmul.f32 %v1076, %v1748
        %v1765 = vmul.f32 %v1077, %v1749
        %v1766 = vmul.f32 %v1078, %v1750
        %v1767 = vmul.f32 %v1079, %v1751
        %v1768 = vmul.f32 %v1080, %v1752
        %v1769 = vmul.f32 %v1081, %v1753
        %v1770 = vmul.f32 %v1082, %v1754
        %v1771 = vmul.f32 %v1083, %v1755
        %v1772 = vmul.f32 %v1084, %v1756
        %v1773 = vld [vmem:[#allocation3] sm:$0xff]
        %v1774 = vld [vmem:[#allocation3 + $0x8] sm:$0xff]
        %v1775 = vld [vmem:[#allocation3 + $0x10] sm:$0xff]
        %v1776 = vld [vmem:[#allocation3 + $0x18] sm:$0xff]
        %v1777 = vld [vmem:[#allocation3 + $0x20] sm:$0xff]
        %v1778 = vld [vmem:[#allocation3 + $0x28] sm:$0xff]
        %v1779 = vld [vmem:[#allocation3 + $0x30] sm:$0xff]
        %v1780 = vld [vmem:[#allocation3 + $0x38] sm:$0xff]
        %v1781 = vld [vmem:[#allocation3 + $0x40] sm:$0xff]
        %v1782 = vld [vmem:[#allocation3 + $0x48] sm:$0xff]
        %v1783 = vld [vmem:[#allocation3 + $0x50] sm:$0xff]
        %v1784 = vld [vmem:[#allocation3 + $0x58] sm:$0xff]
        %v1785 = vld [vmem:[#allocation3 + $0x60] sm:$0xff]
        %v1786 = vld [vmem:[#allocation3 + $0x68] sm:$0xff]
        %v1787 = vld [vmem:[#allocation3 + $0x70] sm:$0xff]
        %v1788 = vld [vmem:[#allocation3 + $0x78] sm:$0xff]
        %v1789 = vpack.c.bf16 %v1758, %v1757
        %v1790 = vpack.c.bf16 %v1760, %v1759
        %v1791 = vpack.c.bf16 %v1762, %v1761
        %v1792 = vpack.c.bf16 %v1764, %v1763
        %v1793 = vpack.c.bf16 %v1766, %v1765
        %v1794 = vpack.c.bf16 %v1768, %v1767
        %v1795 = vpack.c.bf16 %v1770, %v1769
        %v1796 = vpack.c.bf16 %v1772, %v1771
        %v1797 = vld [vmem:[%s445] sm:$0xf]
        %v1798 = vld [vmem:[%s445 + $0x4] sm:$0xf]
        %v1799 = vld [vmem:[%s445 + $0x8] sm:$0xf]
        %v1800 = vld [vmem:[%s445 + $0xc] sm:$0xf]
        %v1801 = vld [vmem:[%s445 + $0x10] sm:$0xf]
        %v1802 = vld [vmem:[%s445 + $0x14] sm:$0xf]
        %v1803 = vld [vmem:[%s445 + $0x18] sm:$0xf]
        %v1804 = vld [vmem:[%s445 + $0x1c] sm:$0xf]
        %v1805 = vld [vmem:[%s445 + $0x20] sm:$0xf]
        %v1806 = vld [vmem:[%s445 + $0x24] sm:$0xf]
        %v1807 = vld [vmem:[%s445 + $0x28] sm:$0xf]
        %v1808 = vld [vmem:[%s445 + $0x2c] sm:$0xf]
        %v1809 = vld [vmem:[%s445 + $0x30] sm:$0xf]
        %v1810 = vld [vmem:[%s445 + $0x34] sm:$0xf]
        %v1811 = vld [vmem:[%s445 + $0x38] sm:$0xf]
        %v1812 = vld [vmem:[%s445 + $0x3c] sm:$0xf]
        %v1829 = vunpack.c.l.b16 %v1797
        %v1830 = vunpack.c.l.b16 %v1798
        %v1831 = vunpack.c.l.b16 %v1799
        %v1832 = vunpack.c.l.b16 %v1800
        %v1833 = vunpack.c.l.b16 %v1801
        %v1834 = vunpack.c.l.b16 %v1802
        %v1835 = vunpack.c.l.b16 %v1803
        %v1836 = vunpack.c.l.b16 %v1804
        %v1837 = vunpack.c.l.b16 %v1805
        %v1838 = vunpack.c.l.b16 %v1806
        %v1839 = vunpack.c.l.b16 %v1807
        %v1840 = vunpack.c.l.b16 %v1808
        %v1841 = vunpack.c.l.b16 %v1809
        %v1842 = vunpack.c.l.b16 %v1810
        %v1843 = vunpack.c.l.b16 %v1811
        %v1844 = vunpack.c.l.b16 %v1812
        %v1845 = vpack.c.b16 %v1830, %v1829
        %v1846 = vpack.c.b16 %v1832, %v1831
        %v1847 = vpack.c.b16 %v1834, %v1833
        %v1848 = vpack.c.b16 %v1836, %v1835
        %v1849 = vpack.c.b16 %v1838, %v1837
        %v1850 = vpack.c.b16 %v1840, %v1839
        %v1851 = vpack.c.b16 %v1842, %v1841
        %v1852 = vpack.c.b16 %v1844, %v1843
        %1861 = vmatpush.bf16.msra.mxu0 %v1852
        %1862 = vmatpush.bf16.msra.mxu0 %v1851
        %1863 = vmatpush.bf16.msra.mxu0 %v1850
        %1864 = vmatpush.bf16.msra.mxu0 %v1849
        %1865 = vmatpush.bf16.msra.mxu0 %v1848
        %1866 = vmatpush.bf16.msra.mxu0 %v1847
        %1867 = vmatpush.bf16.msra.mxu0 %v1846
        %1868 = vmatpush.bf16.msra.mxu0 %v1845
        %1869 = vmatmul.bf16.gmra.mxu0 %v1789
        %v1870 = vpop.f32.mrf.mxu0
        %v1871 = vadd.f32 0.0, %v1870
        %v1872 = vpop.f32.mrf.mxu0
        %v1873 = vadd.f32 0.0, %v1872
        %1874 = vmatmul.bf16.gmra.mxu0 %v1790
        %v1875 = vpop.f32.mrf.mxu0
        %v1876 = vadd.f32 0.0, %v1875
        %v1877 = vpop.f32.mrf.mxu0
        %v1878 = vadd.f32 0.0, %v1877
        %1879 = vmatmul.bf16.gmra.mxu0 %v1791
        %v1880 = vpop.f32.mrf.mxu0
        %v1881 = vadd.f32 0.0, %v1880
        %v1882 = vpop.f32.mrf.mxu0
        %v1883 = vadd.f32 0.0, %v1882
        %1884 = vmatmul.bf16.gmra.mxu0 %v1792
        %v1885 = vpop.f32.mrf.mxu0
        %v1886 = vadd.f32 0.0, %v1885
        %v1887 = vpop.f32.mrf.mxu0
        %v1888 = vadd.f32 0.0, %v1887
        %1889 = vmatmul.bf16.gmra.mxu0 %v1793
        %v1890 = vpop.f32.mrf.mxu0
        %v1891 = vadd.f32 0.0, %v1890
        %v1892 = vpop.f32.mrf.mxu0
        %v1893 = vadd.f32 0.0, %v1892
        %1894 = vmatmul.bf16.gmra.mxu0 %v1794
        %v1895 = vpop.f32.mrf.mxu0
        %v1896 = vadd.f32 0.0, %v1895
        %v1897 = vpop.f32.mrf.mxu0
        %v1898 = vadd.f32 0.0, %v1897
        %1899 = vmatmul.bf16.gmra.mxu0 %v1795
        %v1900 = vpop.f32.mrf.mxu0
        %v1901 = vadd.f32 0.0, %v1900
        %v1902 = vpop.f32.mrf.mxu0
        %v1903 = vadd.f32 0.0, %v1902
        %1904 = vmatmul.bf16.gmra.mxu0 %v1796
        %v1905 = vpop.f32.mrf.mxu0
        %v1906 = vadd.f32 0.0, %v1905
        %v1907 = vpop.f32.mrf.mxu0
        %v1908 = vadd.f32 0.0, %v1907
        %1909 = vdwg.mxu0
        %v1910 = vadd.f32 %v1773, %v1871
        %v1911 = vadd.f32 %v1774, %v1873
        %v1912 = vadd.f32 %v1775, %v1876
        %v1913 = vadd.f32 %v1776, %v1878
        %v1914 = vadd.f32 %v1777, %v1881
        %v1915 = vadd.f32 %v1778, %v1883
        %v1916 = vadd.f32 %v1779, %v1886
        %v1917 = vadd.f32 %v1780, %v1888
        %v1918 = vadd.f32 %v1781, %v1891
        %v1919 = vadd.f32 %v1782, %v1893
        %v1920 = vadd.f32 %v1783, %v1896
        %v1921 = vadd.f32 %v1784, %v1898
        %v1922 = vadd.f32 %v1785, %v1901
        %v1923 = vadd.f32 %v1786, %v1903
        %v1924 = vadd.f32 %v1787, %v1906
        %v1925 = vadd.f32 %v1788, %v1908
        %1926 = vst [vmem:[#allocation3] sm:$0xff] %v1910
        %1927 = vst [vmem:[#allocation3 + $0x8] sm:$0xff] %v1911
        %1928 = vst [vmem:[#allocation3 + $0x10] sm:$0xff] %v1912
        %1929 = vst [vmem:[#allocation3 + $0x18] sm:$0xff] %v1913
        %1930 = vst [vmem:[#allocation3 + $0x20] sm:$0xff] %v1914
        %1931 = vst [vmem:[#allocation3 + $0x28] sm:$0xff] %v1915
        %1932 = vst [vmem:[#allocation3 + $0x30] sm:$0xff] %v1916
        %1933 = vst [vmem:[#allocation3 + $0x38] sm:$0xff] %v1917
        %1934 = vst [vmem:[#allocation3 + $0x40] sm:$0xff] %v1918
        %1935 = vst [vmem:[#allocation3 + $0x48] sm:$0xff] %v1919
        %1936 = vst [vmem:[#allocation3 + $0x50] sm:$0xff] %v1920
        %1937 = vst [vmem:[#allocation3 + $0x58] sm:$0xff] %v1921
        %1938 = vst [vmem:[#allocation3 + $0x60] sm:$0xff] %v1922
        %1939 = vst [vmem:[#allocation3 + $0x68] sm:$0xff] %v1923
        %1940 = vst [vmem:[#allocation3 + $0x70] sm:$0xff] %v1924
        %1941 = vst [vmem:[#allocation3 + $0x78] sm:$0xff] %v1925
        %p1942 = scmp.eq.s32.totalorder %s23, 1
        // Predicated region
        $region94: #{mlp_forward.1} parent=84 // pred_check
          %p1943 = pneg %p1942
        $region95: #{mlp_forward.1} parent=84 // pred_check_branch
          %1945 = sbr.rel (%p1943) target = $region97
        $region96: #{mlp_forward.1} parent=84 // pred_region
          %v1946 = vld [vmem:[#allocation3] sm:$0xff]
          %v1947 = vld [vmem:[#allocation3 + $0x8] sm:$0xff]
          %v1948 = vld [vmem:[#allocation3 + $0x10] sm:$0xff]
          %v1949 = vld [vmem:[#allocation3 + $0x18] sm:$0xff]
          %v1950 = vld [vmem:[#allocation3 + $0x20] sm:$0xff]
          %v1951 = vld [vmem:[#allocation3 + $0x28] sm:$0xff]
          %v1952 = vld [vmem:[#allocation3 + $0x30] sm:$0xff]
          %v1953 = vld [vmem:[#allocation3 + $0x38] sm:$0xff]
          %v1954 = vld [vmem:[#allocation3 + $0x40] sm:$0xff]
          %v1955 = vld [vmem:[#allocation3 + $0x48] sm:$0xff]
          %v1956 = vld [vmem:[#allocation3 + $0x50] sm:$0xff]
          %v1957 = vld [vmem:[#allocation3 + $0x58] sm:$0xff]
          %v1958 = vld [vmem:[#allocation3 + $0x60] sm:$0xff]
          %v1959 = vld [vmem:[#allocation3 + $0x68] sm:$0xff]
          %v1960 = vld [vmem:[#allocation3 + $0x70] sm:$0xff]
          %v1961 = vld [vmem:[#allocation3 + $0x78] sm:$0xff]
          %v1962 = vld [vmem:[%s6] sm:$0x1]
          %v1964 = vperm.slane %v1962, 0
          %v1966 = vadd.f32 %v1946, %v1964
          %v1967 = vadd.f32 %v1947, %v1964
          %v1968 = vadd.f32 %v1948, %v1964
          %v1969 = vadd.f32 %v1949, %v1964
          %v1970 = vadd.f32 %v1950, %v1964
          %v1971 = vadd.f32 %v1951, %v1964
          %v1972 = vadd.f32 %v1952, %v1964
          %v1973 = vadd.f32 %v1953, %v1964
          %v1974 = vadd.f32 %v1954, %v1964
          %v1975 = vadd.f32 %v1955, %v1964
          %v1976 = vadd.f32 %v1956, %v1964
          %v1977 = vadd.f32 %v1957, %v1964
          %v1978 = vadd.f32 %v1958, %v1964
          %v1979 = vadd.f32 %v1959, %v1964
          %v1980 = vadd.f32 %v1960, %v1964
          %v1981 = vadd.f32 %v1961, %v1964
          %1982 = vst [vmem:[%s451] sm:$0xff] %v1966
          %1983 = vst [vmem:[%s451 + $0x8] sm:$0xff] %v1967
          %1984 = vst [vmem:[%s451 + $0x10] sm:$0xff] %v1968
          %1985 = vst [vmem:[%s451 + $0x18] sm:$0xff] %v1969
          %1986 = vst [vmem:[%s451 + $0x20] sm:$0xff] %v1970
          %1987 = vst [vmem:[%s451 + $0x28] sm:$0xff] %v1971
          %1988 = vst [vmem:[%s451 + $0x30] sm:$0xff] %v1972
          %1989 = vst [vmem:[%s451 + $0x38] sm:$0xff] %v1973
          %1990 = vst [vmem:[%s451 + $0x40] sm:$0xff] %v1974
          %1991 = vst [vmem:[%s451 + $0x48] sm:$0xff] %v1975
          %1992 = vst [vmem:[%s451 + $0x50] sm:$0xff] %v1976
          %1993 = vst [vmem:[%s451 + $0x58] sm:$0xff] %v1977
          %1994 = vst [vmem:[%s451 + $0x60] sm:$0xff] %v1978
          %1995 = vst [vmem:[%s451 + $0x68] sm:$0xff] %v1979
          %1996 = vst [vmem:[%s451 + $0x70] sm:$0xff] %v1980
          %1997 = vst [vmem:[%s451 + $0x78] sm:$0xff] %v1981
        $region97: #{mlp_forward.1} parent=84 // pred_fallthru
          _
        %s1998 = smul.u32 16, %s22
        %p1999 = scmp.lt.s32.totalorder %s1998, 15
        %s2000 = scalar_select %p1999, %s1998, 15
        %s2001 = smul.addr %s2000, 8
        %s2002 = scalar_lea.vmem %s7, %s2001
        // Predicated region
        $region98: #{mlp_forward.1} parent=84 // pred_check
          %p2003 = pneg %p215
        $region99: #{mlp_forward.1} parent=84 // pred_check_branch
          %2005 = sbr.rel (%p2003) target = $region101
        $region100: #{mlp_forward.1} parent=84 // pred_region
          %s2006 = smul.u32 16, %s22
        $region101: #{mlp_forward.1} parent=84 // pred_fallthru
          _
        // Predicated region
        $region102: #{mlp_forward.1} parent=84 // pred_check
          %p2007 = pneg %p215
        $region103: #{mlp_forward.1} parent=84 // pred_check_branch
          %2009 = sbr.rel (%p2007) target = $region105
        $region104: #{mlp_forward.1} parent=84 // pred_region
          %s2010 = smul.u32 16, %s22
          %p2011 = scmp.lt.s32.totalorder %s2010, 15
          %s2012 = scalar_select %p2011, %s2010, 15
          %s2013 = smul.addr %s2012, 8
          %s2014 = scalar_lea.vmem %s7, %s2013
        $region105: #{mlp_forward.1} parent=84 // pred_fallthru
          _
      $region85: #{mlp_forward.1} parent=5 // pred_fallthru
        _
      %p2015 = scmp.le.s32.totalorder 2, %s13
      // Predicated region
      $region106: #{mlp_forward.1} parent=5 // pred_check
        %p2016 = pneg %p2015
      $region107: #{mlp_forward.1} parent=5 // pred_check_branch
        %2018 = sbr.rel (%p2016) target = $region109
      $region108: #{mlp_forward.1} parent=5 // pred_region
        %s2019 = ssub.s32 %s13, 2
      $region109: #{mlp_forward.1} parent=5 // pred_fallthru
        _
    $region6: #{mlp_forward.1} parent=1 // loop_footer
      %s17 = sadd.s32 1, %s13
    $region7: #{mlp_forward.1} parent=1 // loop_footer_branch
      %12 = sbr.rel target = $region3
    $region8: #{mlp_forward.1} parent=1 // loop_exit
      _

</llo_original>
